<compile_context>
chip_gen: v7x
topology: tpu7x:2x2x1
jax: 0.10.0
libtpu: 0.0.40
codegen_flags: <defaults>
</compile_context>

<pallas_src>
import functools
import math

import jax
import jax.numpy as jnp
from jax.experimental import pallas as pl
from jax.experimental.pallas import tpu as pltpu


def _mhsa_kernel(q_ref, k_ref, v_ref,
                 wq_ref, bq_ref, wk_ref, wv_ref, bv_ref,
                 wo_ref, bo_ref,
                 o_ref, *, num_heads):
    """One batch-block grid step (all heads fused).

    Blocks:
      q/k/v_ref      : (TB, S, D)  activation blocks for this batch block
      wq/wk/wv/wo    : (D, D)      bf16 weights (scale folded into wq)
      bq/bv/bo       : (1, D)      f32 biases (scale folded into bq; b_k dropped)
      o_ref          : (TB, S, D)  output block
    """
    TB, S, D = q_ref.shape
    d_k = D // num_heads

    # ---- fused full-width projections (MXU, bf16 operands, f32 accumulate) --
    q2 = q_ref[...].reshape(TB * S, D).astype(jnp.bfloat16)
    k2 = k_ref[...].reshape(TB * S, D).astype(jnp.bfloat16)
    v2 = v_ref[...].reshape(TB * S, D).astype(jnp.bfloat16)

    qh = jnp.dot(q2, wq_ref[...], preferred_element_type=jnp.float32) + bq_ref[...]
    # b_k omitted: q_i . b_k is constant across keys, cancels in softmax.
    kh = jnp.dot(k2, wk_ref[...], preferred_element_type=jnp.float32)
    vh = jnp.dot(v2, wv_ref[...], preferred_element_type=jnp.float32) + bv_ref[...]

    qh = qh.reshape(TB, S, D)
    kh = kh.reshape(TB, S, D)
    vh = vh.reshape(TB, S, D)

    # ---- causal (look-ahead) mask, built once per grid step -----------------
    row = jax.lax.broadcasted_iota(jnp.int32, (S, S), 0)
    col = jax.lax.broadcasted_iota(jnp.int32, (S, S), 1)
    causal = (col > row)[None]                                   # (1, S, S)

    # ---- per-head attention (scores / PV are inherently d_k wide) -----------
    # TODO(synk): for large S, switch to flash-style K-tiling (online max/sum,
    # causal block skipping) so the (TB, S, S) score tile never materializes.
    ctx_parts = []
    for h in range(num_heads):
        sl = slice(h * d_k, (h + 1) * d_k)
        q_h = qh[:, :, sl].astype(jnp.bfloat16)
        k_h = kh[:, :, sl].astype(jnp.bfloat16)
        v_h = vh[:, :, sl].astype(jnp.bfloat16)

        s = jnp.einsum('bqd,bkd->bqk', q_h, k_h,
                       preferred_element_type=jnp.float32)       # (TB, S, S) f32
        s = jnp.where(causal, jnp.float32(-1.0e9), s)

        m = jnp.max(s, axis=-1, keepdims=True)
        e = jnp.exp(s - m)                                        # f32
        denom = jnp.sum(e, axis=-1, keepdims=True)
        r = pl.reciprocal(denom, approx=True)                     # EUP seed
        r = r * (2.0 - denom * r)                                 # one Newton step

        # Deferred normalization: PV matmul with unnormalized e (bf16), then
        # scale the (TB, S, d_k) context instead of the (TB, S, S) probs.
        ctx_h = jnp.einsum('bqk,bkd->bqd', e.astype(jnp.bfloat16), v_h,
                           preferred_element_type=jnp.float32)
        ctx_parts.append(ctx_h * r)

    ctx = jnp.concatenate(ctx_parts, axis=-1)                     # (TB, S, D)

    # ---- output projection: one full-depth (TB*S, D) @ (D, D) matmul --------
    out = jnp.dot(ctx.reshape(TB * S, D).astype(jnp.bfloat16), wo_ref[...],
                  preferred_element_type=jnp.float32) + bo_ref[...]
    o_ref[...] = out.reshape(TB, S, D).astype(o_ref.dtype)


def _vmem_bytes_estimate(tb, S, D, in_bytes=4):
    """Rough live-VMEM estimate for one grid step with batch block tb."""
    act = 3 * 2 * tb * S * D * in_bytes          # q/k/v blocks, double buffered
    outb = 2 * tb * S * D * in_bytes             # output block, double buffered
    weights = 4 * D * D * 2 + 3 * D * 4          # bf16 weights + f32 biases
    inter = 3 * tb * S * D * 4                   # qh / kh / vh (f32)
    inter += tb * S * S * 4                      # one head's score tile (f32)
    inter += tb * S * D * 4                      # ctx (f32)
    return act + outb + weights + inter


def mhsa_decoder(Q, K, V, params, num_heads, *, block_b=None):
    """Forward pass of MultiHeadSelfAttentionDecoder via a Pallas TPU kernel."""
    B, S, D = Q.shape
    assert K.shape == (B, S, D) and V.shape == (B, S, D)
    assert D % num_heads == 0, "d_model must be divisible by num_heads"
    d_k = D // num_heads
    scale = 1.0 / math.sqrt(d_k)

    # Host-side weight prep (once per call): fold 1/sqrt(d_k) into W_q/b_q and
    # cast MXU operands to bf16.  Biases stay f32 (added after f32 accumulate).
    wq = (params["wq"] * scale).astype(jnp.bfloat16)
    wk = params["wk"].astype(jnp.bfloat16)
    wv = params["wv"].astype(jnp.bfloat16)
    wo = params["wo"].astype(jnp.bfloat16)
    bq = (params["bq"] * scale).astype(jnp.float32)
    bv = params["bv"].astype(jnp.float32)
    bo = params["bo"].astype(jnp.float32)

    # Per-chip VMEM budget (v7x has only 64 MiB; fall back conservatively).
    try:
        vmem_cap = int(pltpu.get_tpu_info().vmem_capacity_bytes)
    except Exception:
        vmem_cap = 80 * 1024 * 1024
    budget = min(int(0.6 * vmem_cap), 80 * 1024 * 1024)

    if block_b is None:
        # Keep >= 2 "parallel" batch steps when possible so both v7x TCs get
        # work; otherwise take the largest block that fits the VMEM budget.
        min_steps = 2 if B >= 2 else 1
        block_b = 1
        for tb in sorted((d for d in range(1, B + 1) if B % d == 0), reverse=True):
            if B // tb >= min_steps and _vmem_bytes_estimate(tb, S, D) <= budget:
                block_b = tb
                break
    assert B % block_b == 0

    est = _vmem_bytes_estimate(block_b, S, D)
    vmem_limit = int(min(100 * 1024 * 1024, max(32 * 1024 * 1024, 2 * est)))

    grid = (B // block_b,)
    x_spec = pl.BlockSpec((block_b, S, D), lambda b: (b, 0, 0))
    w_spec = pl.BlockSpec((D, D), lambda b: (0, 0))    # constant -> VMEM-resident
    b_spec = pl.BlockSpec((1, D), lambda b: (0, 0))

    cost = pl.CostEstimate(
        flops=8 * B * S * D * D + 4 * B * S * S * D,
        transcendentals=B * num_heads * S * S,
        bytes_accessed=4 * B * S * D * Q.dtype.itemsize + 4 * D * D * 2 + 3 * D * 4,
    )

    kernel = functools.partial(_mhsa_kernel, num_heads=num_heads)

    return pl.pallas_call(
        kernel,
        out_shape=jax.ShapeDtypeStruct((B, S, D), Q.dtype),
        grid=grid,
        in_specs=[x_spec, x_spec, x_spec,
                  w_spec, b_spec, w_spec, w_spec, b_spec,
                  w_spec, b_spec],
        out_specs=pl.BlockSpec((block_b, S, D), lambda b: (b, 0, 0)),
        compiler_params=pltpu.CompilerParams(
            dimension_semantics=("parallel",),
            vmem_limit_bytes=vmem_limit,
        ),
        cost_estimate=cost,
    )(Q, K, V, wq, bq, wk, wv, bv, wo, bo)


def init_params(key, d_model):
    # Deterministic init mimicking nn.Linear (uniform +-1/sqrt(fan_in)).
    bound = 1.0 / math.sqrt(d_model)
    keys = jax.random.split(key, 8)
    p = {}
    names = ["wq", "bq", "wk", "bk", "wv", "bv", "wo", "bo"]
    for i, name in enumerate(names):
        if name.startswith("w"):
            p[name] = jax.random.uniform(
                keys[i], (d_model, d_model), jnp.float32, -bound, bound)
        else:
            p[name] = jax.random.uniform(
                keys[i], (1, d_model), jnp.float32, -bound, bound)
    return p


def mhsa_reference(Q, K, V, params, num_heads):
    B, S, D = Q.shape
    d_k = D // num_heads

    def proj(x, w, b):
        return x @ w + b[0]

    def split(x):
        return x.reshape(B, S, num_heads, d_k).transpose(0, 2, 1, 3)

    Qh = split(proj(Q, params["wq"], params["bq"]))
    Kh = split(proj(K, params["wk"], params["bk"]))
    Vh = split(proj(V, params["wv"], params["bv"]))
    scores = jnp.einsum("bhqd,bhkd->bhqk", Qh, Kh) / math.sqrt(d_k)
    mask = jnp.triu(jnp.ones((S, S), bool), k=1)
    scores = jnp.where(mask[None, None], -1.0e9, scores)
    probs = jax.nn.softmax(scores, axis=-1)
    out = jnp.einsum("bhqk,bhkd->bhqd", probs, Vh)
    out = out.transpose(0, 2, 1, 3).reshape(B, S, D)
    return proj(out, params["wo"], params["bo"])


if __name__ == "__main__":
    B, S, D, H = 4, 16, 128, 4
    key = jax.random.PRNGKey(0)
    kq, kk, kv, kp = jax.random.split(key, 4)
    Q = jax.random.normal(kq, (B, S, D), jnp.float32)
    K = jax.random.normal(kk, (B, S, D), jnp.float32)
    V = jax.random.normal(kv, (B, S, D), jnp.float32)
    params = init_params(kp, D)

    out = mhsa_decoder(Q, K, V, params, H)
    out = jax.block_until_ready(out)

    ref = mhsa_reference(Q, K, V, params, H)
    assert out.shape == (B, S, D)
    max_err = float(jnp.max(jnp.abs(out - ref)))
    # bf16 MXU operands vs f32 reference -> relaxed tolerance.
    assert jnp.allclose(out, ref, atol=2e-2, rtol=2e-2), (
        f"mismatch vs reference (max abs err {max_err})")
    print("KERNEL_OK")
</pallas_src>

<mosaic_0001>
module attributes {stable_mosaic.version = 11 : i64} {
  func.func @_mhsa_kernel(%arg0: i32, %arg1: memref<2x16x128xf32, #tpu.memory_space<vmem>>, %arg2: memref<2x16x128xf32, #tpu.memory_space<vmem>>, %arg3: memref<2x16x128xf32, #tpu.memory_space<vmem>>, %arg4: memref<128x128xbf16, #tpu.memory_space<vmem>>, %arg5: memref<1x128xf32, #tpu.memory_space<vmem>>, %arg6: memref<128x128xbf16, #tpu.memory_space<vmem>>, %arg7: memref<128x128xbf16, #tpu.memory_space<vmem>>, %arg8: memref<1x128xf32, #tpu.memory_space<vmem>>, %arg9: memref<128x128xbf16, #tpu.memory_space<vmem>>, %arg10: memref<1x128xf32, #tpu.memory_space<vmem>>, %arg11: memref<2x16x128xf32, #tpu.memory_space<vmem>>) attributes {dimension_semantics = [#tpu.dimension_semantics<parallel>], iteration_bounds = array<i64: 2>, scalar_prefetch = 0 : i64, scratch_operands = 0 : i64, tpu.core_type = #tpu.core_type<tc>, window_params = [{transform_indices = @transform_0, window_bounds = array<i64: 2, 16, 128>}, {transform_indices = @transform_1, window_bounds = array<i64: 2, 16, 128>}, {transform_indices = @transform_2, window_bounds = array<i64: 2, 16, 128>}, {pipeline_mode = #tpu.pipeline_mode<synchronous>, transform_indices = @transform_3, window_bounds = array<i64: 128, 128>}, {pipeline_mode = #tpu.pipeline_mode<synchronous>, transform_indices = @transform_4, window_bounds = array<i64: 1, 128>}, {pipeline_mode = #tpu.pipeline_mode<synchronous>, transform_indices = @transform_5, window_bounds = array<i64: 128, 128>}, {pipeline_mode = #tpu.pipeline_mode<synchronous>, transform_indices = @transform_6, window_bounds = array<i64: 128, 128>}, {pipeline_mode = #tpu.pipeline_mode<synchronous>, transform_indices = @transform_7, window_bounds = array<i64: 1, 128>}, {pipeline_mode = #tpu.pipeline_mode<synchronous>, transform_indices = @transform_8, window_bounds = array<i64: 128, 128>}, {pipeline_mode = #tpu.pipeline_mode<synchronous>, transform_indices = @transform_9, window_bounds = array<i64: 1, 128>}, {transform_indices = @transform_10, window_bounds = array<i64: 2, 16, 128>}]} {
    %c0 = arith.constant 0 : index
    %c0_0 = arith.constant 0 : index
    %c0_1 = arith.constant 0 : index
    %0 = vector.load %arg1[%c0, %c0_0, %c0_1] : memref<2x16x128xf32, #tpu.memory_space<vmem>>, vector<2x16x128xf32>
    %1 = vector.shape_cast %0 : vector<2x16x128xf32> to vector<32x128xf32>
    %2 = arith.truncf %1 : vector<32x128xf32> to vector<32x128xbf16>
    %c0_2 = arith.constant 0 : index
    %c0_3 = arith.constant 0 : index
    %c0_4 = arith.constant 0 : index
    %3 = vector.load %arg2[%c0_2, %c0_3, %c0_4] : memref<2x16x128xf32, #tpu.memory_space<vmem>>, vector<2x16x128xf32>
    %4 = vector.shape_cast %3 : vector<2x16x128xf32> to vector<32x128xf32>
    %5 = arith.truncf %4 : vector<32x128xf32> to vector<32x128xbf16>
    %c0_5 = arith.constant 0 : index
    %c0_6 = arith.constant 0 : index
    %c0_7 = arith.constant 0 : index
    %6 = vector.load %arg3[%c0_5, %c0_6, %c0_7] : memref<2x16x128xf32, #tpu.memory_space<vmem>>, vector<2x16x128xf32>
    %7 = vector.shape_cast %6 : vector<2x16x128xf32> to vector<32x128xf32>
    %8 = arith.truncf %7 : vector<32x128xf32> to vector<32x128xbf16>
    %c0_8 = arith.constant 0 : index
    %c0_9 = arith.constant 0 : index
    %9 = vector.load %arg4[%c0_8, %c0_9] : memref<128x128xbf16, #tpu.memory_space<vmem>>, vector<128x128xbf16>
    %cst = arith.constant dense<0.000000e+00> : vector<32x128xf32>
    %10 = tpu.matmul %2, %9, %cst {dimension_numbers = #tpu.dot_dimension_numbers<[1], [0], [0], [1], [0, 0, 1, 1], [], []>} : vector<32x128xbf16>, vector<128x128xbf16>, vector<32x128xf32> -> vector<32x128xf32>
    %c0_10 = arith.constant 0 : index
    %c0_11 = arith.constant 0 : index
    %11 = vector.load %arg5[%c0_10, %c0_11] : memref<1x128xf32, #tpu.memory_space<vmem>>, vector<1x128xf32>
    %12 = vector.broadcast %11 : vector<1x128xf32> to vector<32x128xf32>
    %13 = arith.addf %10, %12 : vector<32x128xf32>
    %c0_12 = arith.constant 0 : index
    %c0_13 = arith.constant 0 : index
    %14 = vector.load %arg6[%c0_12, %c0_13] : memref<128x128xbf16, #tpu.memory_space<vmem>>, vector<128x128xbf16>
    %cst_14 = arith.constant dense<0.000000e+00> : vector<32x128xf32>
    %15 = tpu.matmul %5, %14, %cst_14 {dimension_numbers = #tpu.dot_dimension_numbers<[1], [0], [0], [1], [0, 0, 1, 1], [], []>} : vector<32x128xbf16>, vector<128x128xbf16>, vector<32x128xf32> -> vector<32x128xf32>
    %c0_15 = arith.constant 0 : index
    %c0_16 = arith.constant 0 : index
    %16 = vector.load %arg7[%c0_15, %c0_16] : memref<128x128xbf16, #tpu.memory_space<vmem>>, vector<128x128xbf16>
    %cst_17 = arith.constant dense<0.000000e+00> : vector<32x128xf32>
    %17 = tpu.matmul %8, %16, %cst_17 {dimension_numbers = #tpu.dot_dimension_numbers<[1], [0], [0], [1], [0, 0, 1, 1], [], []>} : vector<32x128xbf16>, vector<128x128xbf16>, vector<32x128xf32> -> vector<32x128xf32>
    %c0_18 = arith.constant 0 : index
    %c0_19 = arith.constant 0 : index
    %18 = vector.load %arg8[%c0_18, %c0_19] : memref<1x128xf32, #tpu.memory_space<vmem>>, vector<1x128xf32>
    %19 = vector.broadcast %18 : vector<1x128xf32> to vector<32x128xf32>
    %20 = arith.addf %17, %19 : vector<32x128xf32>
    %21 = vector.shape_cast %13 : vector<32x128xf32> to vector<2x16x128xf32>
    %22 = vector.shape_cast %15 : vector<32x128xf32> to vector<2x16x128xf32>
    %23 = vector.shape_cast %20 : vector<32x128xf32> to vector<2x16x128xf32>
    %24 = tpu.iota {dimensions = array<i32: 0>} : vector<16x16xi32>
    %25 = tpu.iota {dimensions = array<i32: 1>} : vector<16x16xi32>
    %26 = arith.cmpi sgt, %25, %24 : vector<16x16xi32>
    %27 = vector.shape_cast %26 : vector<16x16xi1> to vector<1x16x16xi1>
    %28 = vector.extract_strided_slice %21 {offsets = [0, 0, 0], sizes = [2, 16, 32], strides = [1, 1, 1]} : vector<2x16x128xf32> to vector<2x16x32xf32>
    %29 = arith.truncf %28 : vector<2x16x32xf32> to vector<2x16x32xbf16>
    %30 = vector.extract_strided_slice %22 {offsets = [0, 0, 0], sizes = [2, 16, 32], strides = [1, 1, 1]} : vector<2x16x128xf32> to vector<2x16x32xf32>
    %31 = arith.truncf %30 : vector<2x16x32xf32> to vector<2x16x32xbf16>
    %32 = vector.extract_strided_slice %23 {offsets = [0, 0, 0], sizes = [2, 16, 32], strides = [1, 1, 1]} : vector<2x16x128xf32> to vector<2x16x32xf32>
    %33 = arith.truncf %32 : vector<2x16x32xf32> to vector<2x16x32xbf16>
    "tpu.trace_start"() <{level = 10 : i32, message = "bqd,bkd->bqk"}> : () -> ()
    %cst_20 = arith.constant dense<0.000000e+00> : vector<2x16x16xf32>
    %34 = tpu.matmul %29, %31, %cst_20 {dimension_numbers = #tpu.dot_dimension_numbers<[2], [2], [1], [1], [0, 0, 0, 1, 1, 1], [0], [0]>} : vector<2x16x32xbf16>, vector<2x16x32xbf16>, vector<2x16x16xf32> -> vector<2x16x16xf32>
    %cst_21 = arith.constant -1.000000e+09 : f32
    "tpu.trace_stop"() : () -> ()
    %35 = vector.shape_cast %27 : vector<1x16x16xi1> to vector<1x16x16xi1>
    %36 = vector.broadcast %35 : vector<1x16x16xi1> to vector<2x16x16xi1>
    %37 = vector.broadcast %cst_21 : f32 to vector<2x16x16xf32>
    %38 = arith.select %36, %37, %34 : vector<2x16x16xi1>, vector<2x16x16xf32>
    %cst_22 = arith.constant dense<0xFF800000> : vector<2x16xf32>
    %39 = vector.multi_reduction <maximumf>, %38, %cst_22 [2] : vector<2x16x16xf32> to vector<2x16xf32>
    %40 = vector.shape_cast %39 : vector<2x16xf32> to vector<2x16x1xf32>
    %41 = vector.broadcast %40 : vector<2x16x1xf32> to vector<2x16x16xf32>
    %42 = arith.subf %38, %41 : vector<2x16x16xf32>
    %43 = math.exp %42 : vector<2x16x16xf32>
    %cst_23 = arith.constant dense<0.000000e+00> : vector<2x16xf32>
    %44 = vector.multi_reduction <add>, %43, %cst_23 [2] : vector<2x16x16xf32> to vector<2x16xf32>
    %45 = vector.shape_cast %44 : vector<2x16xf32> to vector<2x16x1xf32>
    %46 = tpu.reciprocal %45 {approx = true} : vector<2x16x1xf32> -> vector<2x16x1xf32>
    %47 = arith.mulf %45, %46 : vector<2x16x1xf32>
    %cst_24 = arith.constant 2.000000e+00 : f32
    %48 = vector.broadcast %cst_24 : f32 to vector<2x16x1xf32>
    %49 = arith.subf %48, %47 : vector<2x16x1xf32>
    %50 = arith.mulf %46, %49 : vector<2x16x1xf32>
    %51 = arith.truncf %43 : vector<2x16x16xf32> to vector<2x16x16xbf16>
    "tpu.trace_start"() <{level = 10 : i32, message = "bqk,bkd->bqd"}> : () -> ()
    %cst_25 = arith.constant dense<0.000000e+00> : vector<2x16x32xf32>
    %52 = tpu.matmul %51, %33, %cst_25 {dimension_numbers = #tpu.dot_dimension_numbers<[2], [1], [1], [2], [0, 0, 0, 1, 1, 2], [0], [0]>} : vector<2x16x16xbf16>, vector<2x16x32xbf16>, vector<2x16x32xf32> -> vector<2x16x32xf32>
    "tpu.trace_stop"() : () -> ()
    %53 = vector.broadcast %50 : vector<2x16x1xf32> to vector<2x16x32xf32>
    %54 = arith.mulf %52, %53 : vector<2x16x32xf32>
    %55 = vector.extract_strided_slice %21 {offsets = [0, 0, 32], sizes = [2, 16, 32], strides = [1, 1, 1]} : vector<2x16x128xf32> to vector<2x16x32xf32>
    %56 = arith.truncf %55 : vector<2x16x32xf32> to vector<2x16x32xbf16>
    %57 = vector.extract_strided_slice %22 {offsets = [0, 0, 32], sizes = [2, 16, 32], strides = [1, 1, 1]} : vector<2x16x128xf32> to vector<2x16x32xf32>
    %58 = arith.truncf %57 : vector<2x16x32xf32> to vector<2x16x32xbf16>
    %59 = vector.extract_strided_slice %23 {offsets = [0, 0, 32], sizes = [2, 16, 32], strides = [1, 1, 1]} : vector<2x16x128xf32> to vector<2x16x32xf32>
    %60 = arith.truncf %59 : vector<2x16x32xf32> to vector<2x16x32xbf16>
    "tpu.trace_start"() <{level = 10 : i32, message = "bqd,bkd->bqk"}> : () -> ()
    %cst_26 = arith.constant dense<0.000000e+00> : vector<2x16x16xf32>
    %61 = tpu.matmul %56, %58, %cst_26 {dimension_numbers = #tpu.dot_dimension_numbers<[2], [2], [1], [1], [0, 0, 0, 1, 1, 1], [0], [0]>} : vector<2x16x32xbf16>, vector<2x16x32xbf16>, vector<2x16x16xf32> -> vector<2x16x16xf32>
    %cst_27 = arith.constant -1.000000e+09 : f32
    "tpu.trace_stop"() : () -> ()
    %62 = vector.shape_cast %27 : vector<1x16x16xi1> to vector<1x16x16xi1>
    %63 = vector.broadcast %62 : vector<1x16x16xi1> to vector<2x16x16xi1>
    %64 = vector.broadcast %cst_27 : f32 to vector<2x16x16xf32>
    %65 = arith.select %63, %64, %61 : vector<2x16x16xi1>, vector<2x16x16xf32>
    %cst_28 = arith.constant dense<0xFF800000> : vector<2x16xf32>
    %66 = vector.multi_reduction <maximumf>, %65, %cst_28 [2] : vector<2x16x16xf32> to vector<2x16xf32>
    %67 = vector.shape_cast %66 : vector<2x16xf32> to vector<2x16x1xf32>
    %68 = vector.broadcast %67 : vector<2x16x1xf32> to vector<2x16x16xf32>
    %69 = arith.subf %65, %68 : vector<2x16x16xf32>
    %70 = math.exp %69 : vector<2x16x16xf32>
    %cst_29 = arith.constant dense<0.000000e+00> : vector<2x16xf32>
    %71 = vector.multi_reduction <add>, %70, %cst_29 [2] : vector<2x16x16xf32> to vector<2x16xf32>
    %72 = vector.shape_cast %71 : vector<2x16xf32> to vector<2x16x1xf32>
    %73 = tpu.reciprocal %72 {approx = true} : vector<2x16x1xf32> -> vector<2x16x1xf32>
    %74 = arith.mulf %72, %73 : vector<2x16x1xf32>
    %cst_30 = arith.constant 2.000000e+00 : f32
    %75 = vector.broadcast %cst_30 : f32 to vector<2x16x1xf32>
    %76 = arith.subf %75, %74 : vector<2x16x1xf32>
    %77 = arith.mulf %73, %76 : vector<2x16x1xf32>
    %78 = arith.truncf %70 : vector<2x16x16xf32> to vector<2x16x16xbf16>
    "tpu.trace_start"() <{level = 10 : i32, message = "bqk,bkd->bqd"}> : () -> ()
    %cst_31 = arith.constant dense<0.000000e+00> : vector<2x16x32xf32>
    %79 = tpu.matmul %78, %60, %cst_31 {dimension_numbers = #tpu.dot_dimension_numbers<[2], [1], [1], [2], [0, 0, 0, 1, 1, 2], [0], [0]>} : vector<2x16x16xbf16>, vector<2x16x32xbf16>, vector<2x16x32xf32> -> vector<2x16x32xf32>
    "tpu.trace_stop"() : () -> ()
    %80 = vector.broadcast %77 : vector<2x16x1xf32> to vector<2x16x32xf32>
    %81 = arith.mulf %79, %80 : vector<2x16x32xf32>
    %82 = vector.extract_strided_slice %21 {offsets = [0, 0, 64], sizes = [2, 16, 32], strides = [1, 1, 1]} : vector<2x16x128xf32> to vector<2x16x32xf32>
    %83 = arith.truncf %82 : vector<2x16x32xf32> to vector<2x16x32xbf16>
    %84 = vector.extract_strided_slice %22 {offsets = [0, 0, 64], sizes = [2, 16, 32], strides = [1, 1, 1]} : vector<2x16x128xf32> to vector<2x16x32xf32>
    %85 = arith.truncf %84 : vector<2x16x32xf32> to vector<2x16x32xbf16>
    %86 = vector.extract_strided_slice %23 {offsets = [0, 0, 64], sizes = [2, 16, 32], strides = [1, 1, 1]} : vector<2x16x128xf32> to vector<2x16x32xf32>
    %87 = arith.truncf %86 : vector<2x16x32xf32> to vector<2x16x32xbf16>
    "tpu.trace_start"() <{level = 10 : i32, message = "bqd,bkd->bqk"}> : () -> ()
    %cst_32 = arith.constant dense<0.000000e+00> : vector<2x16x16xf32>
    %88 = tpu.matmul %83, %85, %cst_32 {dimension_numbers = #tpu.dot_dimension_numbers<[2], [2], [1], [1], [0, 0, 0, 1, 1, 1], [0], [0]>} : vector<2x16x32xbf16>, vector<2x16x32xbf16>, vector<2x16x16xf32> -> vector<2x16x16xf32>
    %cst_33 = arith.constant -1.000000e+09 : f32
    "tpu.trace_stop"() : () -> ()
    %89 = vector.shape_cast %27 : vector<1x16x16xi1> to vector<1x16x16xi1>
    %90 = vector.broadcast %89 : vector<1x16x16xi1> to vector<2x16x16xi1>
    %91 = vector.broadcast %cst_33 : f32 to vector<2x16x16xf32>
    %92 = arith.select %90, %91, %88 : vector<2x16x16xi1>, vector<2x16x16xf32>
    %cst_34 = arith.constant dense<0xFF800000> : vector<2x16xf32>
    %93 = vector.multi_reduction <maximumf>, %92, %cst_34 [2] : vector<2x16x16xf32> to vector<2x16xf32>
    %94 = vector.shape_cast %93 : vector<2x16xf32> to vector<2x16x1xf32>
    %95 = vector.broadcast %94 : vector<2x16x1xf32> to vector<2x16x16xf32>
    %96 = arith.subf %92, %95 : vector<2x16x16xf32>
    %97 = math.exp %96 : vector<2x16x16xf32>
    %cst_35 = arith.constant dense<0.000000e+00> : vector<2x16xf32>
    %98 = vector.multi_reduction <add>, %97, %cst_35 [2] : vector<2x16x16xf32> to vector<2x16xf32>
    %99 = vector.shape_cast %98 : vector<2x16xf32> to vector<2x16x1xf32>
    %100 = tpu.reciprocal %99 {approx = true} : vector<2x16x1xf32> -> vector<2x16x1xf32>
    %101 = arith.mulf %99, %100 : vector<2x16x1xf32>
    %cst_36 = arith.constant 2.000000e+00 : f32
    %102 = vector.broadcast %cst_36 : f32 to vector<2x16x1xf32>
    %103 = arith.subf %102, %101 : vector<2x16x1xf32>
    %104 = arith.mulf %100, %103 : vector<2x16x1xf32>
    %105 = arith.truncf %97 : vector<2x16x16xf32> to vector<2x16x16xbf16>
    "tpu.trace_start"() <{level = 10 : i32, message = "bqk,bkd->bqd"}> : () -> ()
    %cst_37 = arith.constant dense<0.000000e+00> : vector<2x16x32xf32>
    %106 = tpu.matmul %105, %87, %cst_37 {dimension_numbers = #tpu.dot_dimension_numbers<[2], [1], [1], [2], [0, 0, 0, 1, 1, 2], [0], [0]>} : vector<2x16x16xbf16>, vector<2x16x32xbf16>, vector<2x16x32xf32> -> vector<2x16x32xf32>
    "tpu.trace_stop"() : () -> ()
    %107 = vector.broadcast %104 : vector<2x16x1xf32> to vector<2x16x32xf32>
    %108 = arith.mulf %106, %107 : vector<2x16x32xf32>
    %109 = vector.extract_strided_slice %21 {offsets = [0, 0, 96], sizes = [2, 16, 32], strides = [1, 1, 1]} : vector<2x16x128xf32> to vector<2x16x32xf32>
    %110 = arith.truncf %109 : vector<2x16x32xf32> to vector<2x16x32xbf16>
    %111 = vector.extract_strided_slice %22 {offsets = [0, 0, 96], sizes = [2, 16, 32], strides = [1, 1, 1]} : vector<2x16x128xf32> to vector<2x16x32xf32>
    %112 = arith.truncf %111 : vector<2x16x32xf32> to vector<2x16x32xbf16>
    %113 = vector.extract_strided_slice %23 {offsets = [0, 0, 96], sizes = [2, 16, 32], strides = [1, 1, 1]} : vector<2x16x128xf32> to vector<2x16x32xf32>
    %114 = arith.truncf %113 : vector<2x16x32xf32> to vector<2x16x32xbf16>
    "tpu.trace_start"() <{level = 10 : i32, message = "bqd,bkd->bqk"}> : () -> ()
    %cst_38 = arith.constant dense<0.000000e+00> : vector<2x16x16xf32>
    %115 = tpu.matmul %110, %112, %cst_38 {dimension_numbers = #tpu.dot_dimension_numbers<[2], [2], [1], [1], [0, 0, 0, 1, 1, 1], [0], [0]>} : vector<2x16x32xbf16>, vector<2x16x32xbf16>, vector<2x16x16xf32> -> vector<2x16x16xf32>
    %cst_39 = arith.constant -1.000000e+09 : f32
    "tpu.trace_stop"() : () -> ()
    %116 = vector.shape_cast %27 : vector<1x16x16xi1> to vector<1x16x16xi1>
    %117 = vector.broadcast %116 : vector<1x16x16xi1> to vector<2x16x16xi1>
    %118 = vector.broadcast %cst_39 : f32 to vector<2x16x16xf32>
    %119 = arith.select %117, %118, %115 : vector<2x16x16xi1>, vector<2x16x16xf32>
    %cst_40 = arith.constant dense<0xFF800000> : vector<2x16xf32>
    %120 = vector.multi_reduction <maximumf>, %119, %cst_40 [2] : vector<2x16x16xf32> to vector<2x16xf32>
    %121 = vector.shape_cast %120 : vector<2x16xf32> to vector<2x16x1xf32>
    %122 = vector.broadcast %121 : vector<2x16x1xf32> to vector<2x16x16xf32>
    %123 = arith.subf %119, %122 : vector<2x16x16xf32>
    %124 = math.exp %123 : vector<2x16x16xf32>
    %cst_41 = arith.constant dense<0.000000e+00> : vector<2x16xf32>
    %125 = vector.multi_reduction <add>, %124, %cst_41 [2] : vector<2x16x16xf32> to vector<2x16xf32>
    %126 = vector.shape_cast %125 : vector<2x16xf32> to vector<2x16x1xf32>
    %127 = tpu.reciprocal %126 {approx = true} : vector<2x16x1xf32> -> vector<2x16x1xf32>
    %128 = arith.mulf %126, %127 : vector<2x16x1xf32>
    %cst_42 = arith.constant 2.000000e+00 : f32
    %129 = vector.broadcast %cst_42 : f32 to vector<2x16x1xf32>
    %130 = arith.subf %129, %128 : vector<2x16x1xf32>
    %131 = arith.mulf %127, %130 : vector<2x16x1xf32>
    %132 = arith.truncf %124 : vector<2x16x16xf32> to vector<2x16x16xbf16>
    "tpu.trace_start"() <{level = 10 : i32, message = "bqk,bkd->bqd"}> : () -> ()
    %cst_43 = arith.constant dense<0.000000e+00> : vector<2x16x32xf32>
    %133 = tpu.matmul %132, %114, %cst_43 {dimension_numbers = #tpu.dot_dimension_numbers<[2], [1], [1], [2], [0, 0, 0, 1, 1, 2], [0], [0]>} : vector<2x16x16xbf16>, vector<2x16x32xbf16>, vector<2x16x32xf32> -> vector<2x16x32xf32>
    "tpu.trace_stop"() : () -> ()
    %134 = vector.broadcast %131 : vector<2x16x1xf32> to vector<2x16x32xf32>
    %135 = arith.mulf %133, %134 : vector<2x16x32xf32>
    %136 = tpu.concatenate %54, %81, %108, %135 in 2 : vector<2x16x32xf32>, vector<2x16x32xf32>, vector<2x16x32xf32>, vector<2x16x32xf32> -> vector<2x16x128xf32>
    %137 = vector.shape_cast %136 : vector<2x16x128xf32> to vector<32x128xf32>
    %138 = arith.truncf %137 : vector<32x128xf32> to vector<32x128xbf16>
    %c0_44 = arith.constant 0 : index
    %c0_45 = arith.constant 0 : index
    %139 = vector.load %arg9[%c0_44, %c0_45] : memref<128x128xbf16, #tpu.memory_space<vmem>>, vector<128x128xbf16>
    %cst_46 = arith.constant dense<0.000000e+00> : vector<32x128xf32>
    %140 = tpu.matmul %138, %139, %cst_46 {dimension_numbers = #tpu.dot_dimension_numbers<[1], [0], [0], [1], [0, 0, 1, 1], [], []>} : vector<32x128xbf16>, vector<128x128xbf16>, vector<32x128xf32> -> vector<32x128xf32>
    %c0_47 = arith.constant 0 : index
    %c0_48 = arith.constant 0 : index
    %141 = vector.load %arg10[%c0_47, %c0_48] : memref<1x128xf32, #tpu.memory_space<vmem>>, vector<1x128xf32>
    %142 = vector.broadcast %141 : vector<1x128xf32> to vector<32x128xf32>
    %143 = arith.addf %140, %142 : vector<32x128xf32>
    %144 = vector.shape_cast %143 : vector<32x128xf32> to vector<2x16x128xf32>
    %c0_49 = arith.constant 0 : index
    %c0_50 = arith.constant 0 : index
    %c0_51 = arith.constant 0 : index
    %145 = vector.load %arg11[%c0_49, %c0_50, %c0_51] : memref<2x16x128xf32, #tpu.memory_space<vmem>>, vector<2x16x128xf32>
    tpu.vector_store %arg11[%c0_49, %c0_50, %c0_51], %144 {strides = array<i32>} : memref<2x16x128xf32, #tpu.memory_space<vmem>>, vector<2x16x128xf32>,
    return
  }
  func.func @transform_0(%arg0: i32) -> (i32, i32, i32) {
    %c0_i32 = arith.constant 0 : i32
    %c0_i32_0 = arith.constant 0 : i32
    %c0_i32_1 = arith.constant 0 : i32
    return %arg0, %c0_i32, %c0_i32_0 : i32, i32, i32
  }
  func.func @transform_1(%arg0: i32) -> (i32, i32, i32) {
    %c0_i32 = arith.constant 0 : i32
    %c0_i32_0 = arith.constant 0 : i32
    %c0_i32_1 = arith.constant 0 : i32
    return %arg0, %c0_i32, %c0_i32_0 : i32, i32, i32
  }
  func.func @transform_2(%arg0: i32) -> (i32, i32, i32) {
    %c0_i32 = arith.constant 0 : i32
    %c0_i32_0 = arith.constant 0 : i32
    %c0_i32_1 = arith.constant 0 : i32
    return %arg0, %c0_i32, %c0_i32_0 : i32, i32, i32
  }
  func.func @transform_3(%arg0: i32) -> (i32, i32) {
    %c0_i32 = arith.constant 0 : i32
    %c0_i32_0 = arith.constant 0 : i32
    %c0_i32_1 = arith.constant 0 : i32
    return %c0_i32, %c0_i32_0 : i32, i32
  }
  func.func @transform_4(%arg0: i32) -> (i32, i32) {
    %c0_i32 = arith.constant 0 : i32
    %c0_i32_0 = arith.constant 0 : i32
    %c0_i32_1 = arith.constant 0 : i32
    return %c0_i32, %c0_i32_0 : i32, i32
  }
  func.func @transform_5(%arg0: i32) -> (i32, i32) {
    %c0_i32 = arith.constant 0 : i32
    %c0_i32_0 = arith.constant 0 : i32
    %c0_i32_1 = arith.constant 0 : i32
    return %c0_i32, %c0_i32_0 : i32, i32
  }
  func.func @transform_6(%arg0: i32) -> (i32, i32) {
    %c0_i32 = arith.constant 0 : i32
    %c0_i32_0 = arith.constant 0 : i32
    %c0_i32_1 = arith.constant 0 : i32
    return %c0_i32, %c0_i32_0 : i32, i32
  }
  func.func @transform_7(%arg0: i32) -> (i32, i32) {
    %c0_i32 = arith.constant 0 : i32
    %c0_i32_0 = arith.constant 0 : i32
    %c0_i32_1 = arith.constant 0 : i32
    return %c0_i32, %c0_i32_0 : i32, i32
  }
  func.func @transform_8(%arg0: i32) -> (i32, i32) {
    %c0_i32 = arith.constant 0 : i32
    %c0_i32_0 = arith.constant 0 : i32
    %c0_i32_1 = arith.constant 0 : i32
    return %c0_i32, %c0_i32_0 : i32, i32
  }
  func.func @transform_9(%arg0: i32) -> (i32, i32) {
    %c0_i32 = arith.constant 0 : i32
    %c0_i32_0 = arith.constant 0 : i32
    %c0_i32_1 = arith.constant 0 : i32
    return %c0_i32, %c0_i32_0 : i32, i32
  }
  func.func @transform_10(%arg0: i32) -> (i32, i32, i32) {
    %c0_i32 = arith.constant 0 : i32
    %c0_i32_0 = arith.constant 0 : i32
    %c0_i32_1 = arith.constant 0 : i32
    return %arg0, %c0_i32, %c0_i32_0 : i32, i32, i32
  }
}

</mosaic_0001>

<llo_original>
// kernel: tpu_custom_call.1
$region0: #{tpu_custom_call.1}
  #allocation0 [shape = 'u32[]', space=smem, size = 0x4, offset = 0x4, fixed_abs, tag = 'smem constant byte address 0x4 - core index']
  #allocation1 [shape = 'u32[144,128]{1,0:T(1,128)}', space=vmem, size = 0x12000, scoped, tag = 'internal scratch']
  %s0 = inlined_call_operand.hbm [shape: f32[4,16,128], index: 0, kind: input, shape index: {}]
  %s1 = inlined_call_operand.hbm [shape: f32[4,16,128], index: 1, kind: input, shape index: {}]
  %s2 = inlined_call_operand.hbm [shape: f32[4,16,128], index: 2, kind: input, shape index: {}]
  %s3 = inlined_call_operand.hbm [shape: bf16[128,128], index: 3, kind: input, shape index: {}]
  %s4 = inlined_call_operand.vmem [shape: f32[1,128], index: 4, kind: input, shape index: {}]
  %s5 = inlined_call_operand.hbm [shape: bf16[128,128], index: 5, kind: input, shape index: {}]
  %s6 = inlined_call_operand.hbm [shape: bf16[128,128], index: 6, kind: input, shape index: {}]
  %s7 = inlined_call_operand.vmem [shape: f32[1,128], index: 7, kind: input, shape index: {}]
  %s8 = inlined_call_operand.hbm [shape: bf16[128,128], index: 8, kind: input, shape index: {}]
  %s9 = inlined_call_operand.vmem [shape: f32[1,128], index: 9, kind: input, shape index: {}]
  %s10 = inlined_call_operand.hbm [shape: f32[4,16,128], index: 10, kind: output, shape index: {}]
  %s11 = sld [smem:[#allocation0]]
  $region101: #{tpu_custom_call.1} parent=0
    _
  %s13 = ssub.s32 1, %s11
  %s14 = scalar_select 0, %s13, %s11
  $region1: #{tpu_custom_call.1} parent=0
    #allocation2 [shape = 'u8[32768]{0}', space=vmem, size = 0x8000, scoped, tag = 'input window, operand 0']
    #allocation3 [shape = 's32[2]{0}', space=sflag, size = 0x8, scoped, tag = 'scoped memory for tpu_custom_call.1']
    #allocation4 [shape = 's32[2]{0}', space=sflag, size = 0x8, scoped, tag = 'scoped memory for tpu_custom_call.1']
    #allocation5 [shape = 'u8[32768]{0}', space=vmem, size = 0x8000, scoped, tag = 'input window, operand 1']
    #allocation6 [shape = 's32[2]{0}', space=sflag, size = 0x8, scoped, tag = 'scoped memory for tpu_custom_call.1']
    #allocation7 [shape = 'u8[32768]{0}', space=vmem, size = 0x8000, scoped, tag = 'input window, operand 2']
    #allocation8 [shape = 'u8[32768]{0}', space=vmem, size = 0x8000, scoped, tag = 'input window, operand 3, single buffered']
    #allocation9 [shape = 's32[1]{0}', space=sflag, size = 0x4, scoped, tag = 'scoped memory for tpu_custom_call.1']
    #allocation10 [shape = 'u8[32768]{0}', space=vmem, size = 0x8000, scoped, tag = 'input window, operand 5, single buffered']
    #allocation11 [shape = 'u8[32768]{0}', space=vmem, size = 0x8000, scoped, tag = 'input window, operand 6, single buffered']
    #allocation12 [shape = 's32[1]{0}', space=sflag, size = 0x4, scoped, tag = 'scoped memory for tpu_custom_call.1']
    #allocation13 [shape = 'u8[32768]{0}', space=vmem, size = 0x8000, scoped, tag = 'input window, operand 8, single buffered']
    #allocation14 [shape = 'u8[32768]{0}', space=vmem, size = 0x8000, scoped, tag = 'output window, operand 0']
    %15 = vsyncpa [#allocation3], 0
    %s16 = scalar_lea.sflag [#allocation3], 1
    %17 = vsyncpa %s16, 0
    %18 = vsyncpa [#allocation6], 0
    %s19 = scalar_lea.sflag [#allocation6], 1
    %20 = vsyncpa %s19, 0
    %21 = vsyncpa [#allocation9], 0
    %22 = vsyncpa [#allocation12], 0
    %23 = vsyncpa [#allocation4], 0
    %s24 = scalar_lea.sflag [#allocation4], 1
    %25 = vsyncpa %s24, 0
    loop: start=0, step=1, limit=4
    $region2: #{tpu_custom_call.1} parent=1 // loop_pre_header
      _
    $region3: #{tpu_custom_call.1} parent=1 // loop_header
      %s27 = sphi 0, %s31
      %p28 = scmp.ge.s32.totalorder %s27, 4
      %s37 = sphi 0, %s39
      %s40 = sphi 0, %s37
      %s41 = sphi 0, %s40
      %s57 = sphi 0, %s41
      %s63 = sphi 0, %s65
      %s66 = sphi 0, %s63
      %s67 = sphi 0, %s66
      %s83 = sphi 0, %s67
      %s89 = sphi 0, %s91
      %s92 = sphi 0, %s89
      %s93 = sphi 0, %s92
      %s109 = sphi 0, %s93
      %s113 = sphi 0, %s113
      %s115 = sphi 0, %s113
      %s116 = sphi 0, %s115
      %s130 = sphi 0, %s116
      %s134 = sphi 0, %s134
      %s136 = sphi 0, %s134
      %s137 = sphi 0, %s136
      %s151 = sphi 0, %s137
      %s155 = sphi 0, %s155
      %s157 = sphi 0, %s155
      %s158 = sphi 0, %s157
      %s172 = sphi 0, %s158
      %s176 = sphi 0, %s176
      %s178 = sphi 0, %s176
      %s179 = sphi 0, %s178
      %s193 = sphi 0, %s179
      %s197 = sphi 0, %s197
      %s199 = sphi 0, %s197
      %s200 = sphi 0, %s199
      %s214 = sphi 0, %s200
      %s218 = sphi 0, %s218
      %s220 = sphi 0, %s218
      %s221 = sphi 0, %s220
      %s235 = sphi 0, %s221
      %s239 = sphi 0, %s239
      %s241 = sphi 0, %s239
      %s242 = sphi 0, %s241
      %s256 = sphi 0, %s242
      %s262 = sphi 0, %s264
      %s265 = sphi 0, %s262
      %s266 = sphi 0, %s265
      %s282 = sphi 0, %s266
    $region4: #{tpu_custom_call.1} parent=1 // loop_header_branch
      %30 = sbr.rel (%p28) target = $region8
    $region5: #{tpu_custom_call.1} parent=1 // loop_body
      %s32 = ssub.s32 %s27, 1
      %s33 = ssub.s32 %s27, 2
      %s34 = sadd.s32 %s27, 1
      %s35 = ssub.s32 %s27, %s34
      %p36 = scmp.eq.s32.totalorder %s35, 0
      %s38 = sadd.s32 %s37, 1
      %s39 = scalar_select %p36, %s37, %s38
      %p42 = pneg %p36
      %p43 = scmp.eq.s32.totalorder %s27, 1
      %p44 = por %p42, %p43
      %p45 = scmp.ne.s32.totalorder %s37, %s40
      %p46 = scmp.eq.s32.totalorder %s27, 0
      %p47 = por %p45, %p46
      %p48 = scmp.ne.s32.totalorder %s37, %s40
      %p49 = scmp.eq.s32.totalorder %s32, 1
      %p50 = por %p48, %p49
      %p51 = scmp.ne.s32.totalorder %s40, %s41
      %p52 = scmp.eq.s32.totalorder %s32, 0
      %p53 = por %p51, %p52
      %p54 = scmp.ne.s32.totalorder %s40, %s41
      %p55 = scmp.eq.s32.totalorder %s33, 1
      %p56 = por %p54, %p55
      %p58 = scmp.ne.s32.totalorder %s41, %s57
      %p59 = scmp.eq.s32.totalorder %s33, 0
      %p60 = por %p58, %p59
      %s61 = ssub.s32 %s27, %s34
      %p62 = scmp.eq.s32.totalorder %s61, 0
      %s64 = sadd.s32 %s63, 1
      %s65 = scalar_select %p62, %s63, %s64
      %p68 = pneg %p62
      %p69 = scmp.eq.s32.totalorder %s27, 1
      %p70 = por %p68, %p69
      %p71 = scmp.ne.s32.totalorder %s63, %s66
      %p72 = scmp.eq.s32.totalorder %s27, 0
      %p73 = por %p71, %p72
      %p74 = scmp.ne.s32.totalorder %s63, %s66
      %p75 = scmp.eq.s32.totalorder %s32, 1
      %p76 = por %p74, %p75
      %p77 = scmp.ne.s32.totalorder %s66, %s67
      %p78 = scmp.eq.s32.totalorder %s32, 0
      %p79 = por %p77, %p78
      %p80 = scmp.ne.s32.totalorder %s66, %s67
      %p81 = scmp.eq.s32.totalorder %s33, 1
      %p82 = por %p80, %p81
      %p84 = scmp.ne.s32.totalorder %s67, %s83
      %p85 = scmp.eq.s32.totalorder %s33, 0
      %p86 = por %p84, %p85
      %s87 = ssub.s32 %s27, %s34
      %p88 = scmp.eq.s32.totalorder %s87, 0
      %s90 = sadd.s32 %s89, 1
      %s91 = scalar_select %p88, %s89, %s90
      %p94 = pneg %p88
      %p95 = scmp.eq.s32.totalorder %s27, 1
      %p96 = por %p94, %p95
      %p97 = scmp.ne.s32.totalorder %s89, %s92
      %p98 = scmp.eq.s32.totalorder %s27, 0
      %p99 = por %p97, %p98
      %p100 = scmp.ne.s32.totalorder %s89, %s92
      %p101 = scmp.eq.s32.totalorder %s32, 1
      %p102 = por %p100, %p101
      %p103 = scmp.ne.s32.totalorder %s92, %s93
      %p104 = scmp.eq.s32.totalorder %s32, 0
      %p105 = por %p103, %p104
      %p106 = scmp.ne.s32.totalorder %s92, %s93
      %p107 = scmp.eq.s32.totalorder %s33, 1
      %p108 = por %p106, %p107
      %p110 = scmp.ne.s32.totalorder %s93, %s109
      %p111 = scmp.eq.s32.totalorder %s33, 0
      %p112 = por %p110, %p111
      %s114 = sadd.s32 %s113, 1
      %p117 = scmp.eq.s32.totalorder %s27, 1
      %p118 = scmp.ne.s32.totalorder %s113, %s115
      %p119 = scmp.eq.s32.totalorder %s27, 0
      %p120 = por %p118, %p119
      %p121 = scmp.ne.s32.totalorder %s113, %s115
      %p122 = scmp.eq.s32.totalorder %s32, 1
      %p123 = por %p121, %p122
      %p124 = scmp.ne.s32.totalorder %s115, %s116
      %p125 = scmp.eq.s32.totalorder %s32, 0
      %p126 = por %p124, %p125
      %p127 = scmp.ne.s32.totalorder %s115, %s116
      %p128 = scmp.eq.s32.totalorder %s33, 1
      %p129 = por %p127, %p128
      %p131 = scmp.ne.s32.totalorder %s116, %s130
      %p132 = scmp.eq.s32.totalorder %s33, 0
      %p133 = por %p131, %p132
      %s135 = sadd.s32 %s134, 1
      %p138 = scmp.eq.s32.totalorder %s27, 1
      %p139 = scmp.ne.s32.totalorder %s134, %s136
      %p140 = scmp.eq.s32.totalorder %s27, 0
      %p141 = por %p139, %p140
      %p142 = scmp.ne.s32.totalorder %s134, %s136
      %p143 = scmp.eq.s32.totalorder %s32, 1
      %p144 = por %p142, %p143
      %p145 = scmp.ne.s32.totalorder %s136, %s137
      %p146 = scmp.eq.s32.totalorder %s32, 0
      %p147 = por %p145, %p146
      %p148 = scmp.ne.s32.totalorder %s136, %s137
      %p149 = scmp.eq.s32.totalorder %s33, 1
      %p150 = por %p148, %p149
      %p152 = scmp.ne.s32.totalorder %s137, %s151
      %p153 = scmp.eq.s32.totalorder %s33, 0
      %p154 = por %p152, %p153
      %s156 = sadd.s32 %s155, 1
      %p159 = scmp.eq.s32.totalorder %s27, 1
      %p160 = scmp.ne.s32.totalorder %s155, %s157
      %p161 = scmp.eq.s32.totalorder %s27, 0
      %p162 = por %p160, %p161
      %p163 = scmp.ne.s32.totalorder %s155, %s157
      %p164 = scmp.eq.s32.totalorder %s32, 1
      %p165 = por %p163, %p164
      %p166 = scmp.ne.s32.totalorder %s157, %s158
      %p167 = scmp.eq.s32.totalorder %s32, 0
      %p168 = por %p166, %p167
      %p169 = scmp.ne.s32.totalorder %s157, %s158
      %p170 = scmp.eq.s32.totalorder %s33, 1
      %p171 = por %p169, %p170
      %p173 = scmp.ne.s32.totalorder %s158, %s172
      %p174 = scmp.eq.s32.totalorder %s33, 0
      %p175 = por %p173, %p174
      %s177 = sadd.s32 %s176, 1
      %p180 = scmp.eq.s32.totalorder %s27, 1
      %p181 = scmp.ne.s32.totalorder %s176, %s178
      %p182 = scmp.eq.s32.totalorder %s27, 0
      %p183 = por %p181, %p182
      %p184 = scmp.ne.s32.totalorder %s176, %s178
      %p185 = scmp.eq.s32.totalorder %s32, 1
      %p186 = por %p184, %p185
      %p187 = scmp.ne.s32.totalorder %s178, %s179
      %p188 = scmp.eq.s32.totalorder %s32, 0
      %p189 = por %p187, %p188
      %p190 = scmp.ne.s32.totalorder %s178, %s179
      %p191 = scmp.eq.s32.totalorder %s33, 1
      %p192 = por %p190, %p191
      %p194 = scmp.ne.s32.totalorder %s179, %s193
      %p195 = scmp.eq.s32.totalorder %s33, 0
      %p196 = por %p194, %p195
      %s198 = sadd.s32 %s197, 1
      %p201 = scmp.eq.s32.totalorder %s27, 1
      %p202 = scmp.ne.s32.totalorder %s197, %s199
      %p203 = scmp.eq.s32.totalorder %s27, 0
      %p204 = por %p202, %p203
      %p205 = scmp.ne.s32.totalorder %s197, %s199
      %p206 = scmp.eq.s32.totalorder %s32, 1
      %p207 = por %p205, %p206
      %p208 = scmp.ne.s32.totalorder %s199, %s200
      %p209 = scmp.eq.s32.totalorder %s32, 0
      %p210 = por %p208, %p209
      %p211 = scmp.ne.s32.totalorder %s199, %s200
      %p212 = scmp.eq.s32.totalorder %s33, 1
      %p213 = por %p211, %p212
      %p215 = scmp.ne.s32.totalorder %s200, %s214
      %p216 = scmp.eq.s32.totalorder %s33, 0
      %p217 = por %p215, %p216
      %s219 = sadd.s32 %s218, 1
      %p222 = scmp.eq.s32.totalorder %s27, 1
      %p223 = scmp.ne.s32.totalorder %s218, %s220
      %p224 = scmp.eq.s32.totalorder %s27, 0
      %p225 = por %p223, %p224
      %p226 = scmp.ne.s32.totalorder %s218, %s220
      %p227 = scmp.eq.s32.totalorder %s32, 1
      %p228 = por %p226, %p227
      %p229 = scmp.ne.s32.totalorder %s220, %s221
      %p230 = scmp.eq.s32.totalorder %s32, 0
      %p231 = por %p229, %p230
      %p232 = scmp.ne.s32.totalorder %s220, %s221
      %p233 = scmp.eq.s32.totalorder %s33, 1
      %p234 = por %p232, %p233
      %p236 = scmp.ne.s32.totalorder %s221, %s235
      %p237 = scmp.eq.s32.totalorder %s33, 0
      %p238 = por %p236, %p237
      %s240 = sadd.s32 %s239, 1
      %p243 = scmp.eq.s32.totalorder %s27, 1
      %p244 = scmp.ne.s32.totalorder %s239, %s241
      %p245 = scmp.eq.s32.totalorder %s27, 0
      %p246 = por %p244, %p245
      %p247 = scmp.ne.s32.totalorder %s239, %s241
      %p248 = scmp.eq.s32.totalorder %s32, 1
      %p249 = por %p247, %p248
      %p250 = scmp.ne.s32.totalorder %s241, %s242
      %p251 = scmp.eq.s32.totalorder %s32, 0
      %p252 = por %p250, %p251
      %p253 = scmp.ne.s32.totalorder %s241, %s242
      %p254 = scmp.eq.s32.totalorder %s33, 1
      %p255 = por %p253, %p254
      %p257 = scmp.ne.s32.totalorder %s242, %s256
      %p258 = scmp.eq.s32.totalorder %s33, 0
      %p259 = por %p257, %p258
      %s260 = ssub.s32 %s27, %s34
      %p261 = scmp.eq.s32.totalorder %s260, 0
      %s263 = sadd.s32 %s262, 1
      %s264 = scalar_select %p261, %s262, %s263
      %p267 = pneg %p261
      %p268 = scmp.eq.s32.totalorder %s27, 1
      %p269 = por %p267, %p268
      %p270 = scmp.ne.s32.totalorder %s262, %s265
      %p271 = scmp.eq.s32.totalorder %s27, 0
      %p272 = por %p270, %p271
      %p273 = scmp.ne.s32.totalorder %s262, %s265
      %p274 = scmp.eq.s32.totalorder %s32, 1
      %p275 = por %p273, %p274
      %p276 = scmp.ne.s32.totalorder %s265, %s266
      %p277 = scmp.eq.s32.totalorder %s32, 0
      %p278 = por %p276, %p277
      %p279 = scmp.ne.s32.totalorder %s265, %s266
      %p280 = scmp.eq.s32.totalorder %s33, 1
      %p281 = por %p279, %p280
      %p283 = scmp.ne.s32.totalorder %s266, %s282
      %p284 = scmp.eq.s32.totalorder %s33, 0
      %p285 = por %p283, %p284
      %p286 = scmp.le.s32.totalorder 1, %s27
      %p287 = scmp.lt.s32.totalorder %s27, 3
      %p288 = pnand %p286, %p287
      %p289 = pneg %p288
      // Predicated region
      $region9: #{tpu_custom_call.1} parent=5 // pred_check
        _
      $region10: #{tpu_custom_call.1} parent=5 // pred_check_branch
        %291 = sbr.rel (%p288) target = $region12
      $region11: #{tpu_custom_call.1} parent=5 // pred_region
        %s292 = ssub.s32 %s27, 1
        // Predicated region
        $region13: #{tpu_custom_call.1} parent=11 // pred_check
          %p293 = pneg %p126
        $region14: #{tpu_custom_call.1} parent=11 // pred_check_branch
          %295 = sbr.rel (%p293) target = $region16
        $region15: #{tpu_custom_call.1} parent=11 // pred_region
          %s297 = ssub.s32 1024, 1024
          %298 = vsyncadd [#allocation9], %s297
          %s299 = sshll.u32 [#allocation8], 4
          %s300 = int_to_ptr.vmem [resolvable:$true] %s299
          %305 = dma.hbm_to_vmem [thread:$0]  %s3, 1024, %s300, [#allocation9], 64, 64, 4
        $region16: #{tpu_custom_call.1} parent=11 // pred_fallthru
          _
        // Predicated region
        $region17: #{tpu_custom_call.1} parent=11 // pred_check
          %p306 = pneg %p147
        $region18: #{tpu_custom_call.1} parent=11 // pred_check_branch
          %308 = sbr.rel (%p306) target = $region20
        $region19: #{tpu_custom_call.1} parent=11 // pred_region
          _
        $region20: #{tpu_custom_call.1} parent=11 // pred_fallthru
          _
        // Predicated region
        $region21: #{tpu_custom_call.1} parent=11 // pred_check
          %p309 = pneg %p168
        $region22: #{tpu_custom_call.1} parent=11 // pred_check_branch
          %311 = sbr.rel (%p309) target = $region24
        $region23: #{tpu_custom_call.1} parent=11 // pred_region
          %s313 = ssub.s32 1024, 1024
          %314 = vsyncadd [#allocation9], %s313
          %s315 = sshll.u32 [#allocation10], 4
          %s316 = int_to_ptr.vmem [resolvable:$true] %s315
          %321 = dma.hbm_to_vmem [thread:$0]  %s5, 1024, %s316, [#allocation9], 64, 64, 4
        $region24: #{tpu_custom_call.1} parent=11 // pred_fallthru
          _
        // Predicated region
        $region25: #{tpu_custom_call.1} parent=11 // pred_check
          %p322 = pneg %p189
        $region26: #{tpu_custom_call.1} parent=11 // pred_check_branch
          %324 = sbr.rel (%p322) target = $region28
        $region27: #{tpu_custom_call.1} parent=11 // pred_region
          %s326 = ssub.s32 1024, 1024
          %327 = vsyncadd [#allocation12], %s326
          %s328 = sshll.u32 [#allocation11], 4
          %s329 = int_to_ptr.vmem [resolvable:$true] %s328
          %334 = dma.hbm_to_vmem [thread:$0]  %s6, 1024, %s329, [#allocation12], 64, 64, 4
        $region28: #{tpu_custom_call.1} parent=11 // pred_fallthru
          _
        // Predicated region
        $region29: #{tpu_custom_call.1} parent=11 // pred_check
          %p335 = pneg %p210
        $region30: #{tpu_custom_call.1} parent=11 // pred_check_branch
          %337 = sbr.rel (%p335) target = $region32
        $region31: #{tpu_custom_call.1} parent=11 // pred_region
          _
        $region32: #{tpu_custom_call.1} parent=11 // pred_fallthru
          _
        // Predicated region
        $region33: #{tpu_custom_call.1} parent=11 // pred_check
          %p338 = pneg %p231
        $region34: #{tpu_custom_call.1} parent=11 // pred_check_branch
          %340 = sbr.rel (%p338) target = $region36
        $region35: #{tpu_custom_call.1} parent=11 // pred_region
          %s342 = ssub.s32 1024, 1024
          %343 = vsyncadd [#allocation12], %s342
          %s344 = sshll.u32 [#allocation13], 4
          %s345 = int_to_ptr.vmem [resolvable:$true] %s344
          %350 = dma.hbm_to_vmem [thread:$0]  %s8, 1024, %s345, [#allocation12], 64, 64, 4
        $region36: #{tpu_custom_call.1} parent=11 // pred_fallthru
          _
        // Predicated region
        $region37: #{tpu_custom_call.1} parent=11 // pred_check
          %p351 = pneg %p252
        $region38: #{tpu_custom_call.1} parent=11 // pred_check_branch
          %353 = sbr.rel (%p351) target = $region40
        $region39: #{tpu_custom_call.1} parent=11 // pred_region
          _
        $region40: #{tpu_custom_call.1} parent=11 // pred_fallthru
          _
      $region12: #{tpu_custom_call.1} parent=5 // pred_fallthru
        _
      %p354 = scmp.lt.s32.totalorder %s27, 2
      // Predicated region
      $region41: #{tpu_custom_call.1} parent=5 // pred_check
        %p355 = pneg %p354
      $region42: #{tpu_custom_call.1} parent=5 // pred_check_branch
        %357 = sbr.rel (%p355) target = $region44
      $region43: #{tpu_custom_call.1} parent=5 // pred_region
        // Predicated region
        $region45: #{tpu_custom_call.1} parent=43 // pred_check
          %p358 = pneg %p47
        $region46: #{tpu_custom_call.1} parent=43 // pred_check_branch
          %360 = sbr.rel (%p358) target = $region48
        $region47: #{tpu_custom_call.1} parent=43 // pred_region
          %s361 = sand.u32 %s37, 1
          %s362 = scalar_lea.sflag [#allocation3], %s361
          %s363 = sand.u32 %s37, 1
          %s364 = smul.addr %s363, 32
          %s365 = scalar_lea.vmem [#allocation2], %s364
          %s366 = smul.u32 2, %s27
          %s368 = ssub.s32 512, 512
          %369 = vsyncadd %s362, %s368
          %s370 = smul.addr %s366, 2
          %s371 = smul.addr %s370, 128
          %s372 = scalar_lea.hbm %s0, %s371
          %s373 = sshll.u32 %s365, 4
          %s374 = int_to_ptr.vmem [resolvable:$true] %s373
          %379 = dma.hbm_to_vmem [thread:$0]  %s372, 512, %s374, %s362, 128, 128, 8
        $region48: #{tpu_custom_call.1} parent=43 // pred_fallthru
          _
        // Predicated region
        $region49: #{tpu_custom_call.1} parent=43 // pred_check
          %p380 = pneg %p73
        $region50: #{tpu_custom_call.1} parent=43 // pred_check_branch
          %382 = sbr.rel (%p380) target = $region52
        $region51: #{tpu_custom_call.1} parent=43 // pred_region
          %s383 = sand.u32 %s27, 1
          %s384 = scalar_lea.sflag [#allocation6], %s383
          %s385 = sand.u32 %s63, 1
          %s386 = smul.addr %s385, 32
          %s387 = scalar_lea.vmem [#allocation5], %s386
          %s388 = smul.u32 2, %s27
          %s390 = ssub.s32 512, 512
          %391 = vsyncadd %s384, %s390
          %s392 = smul.addr %s388, 2
          %s393 = smul.addr %s392, 128
          %s394 = scalar_lea.hbm %s1, %s393
          %s395 = sshll.u32 %s387, 4
          %s396 = int_to_ptr.vmem [resolvable:$true] %s395
          %401 = dma.hbm_to_vmem [thread:$0]  %s394, 512, %s396, %s384, 128, 128, 8
        $region52: #{tpu_custom_call.1} parent=43 // pred_fallthru
          _
        // Predicated region
        $region53: #{tpu_custom_call.1} parent=43 // pred_check
          %p402 = pneg %p99
        $region54: #{tpu_custom_call.1} parent=43 // pred_check_branch
          %404 = sbr.rel (%p402) target = $region56
        $region55: #{tpu_custom_call.1} parent=43 // pred_region
          %s405 = sand.u32 %s27, 1
          %s406 = scalar_lea.sflag [#allocation6], %s405
          %s407 = sand.u32 %s89, 1
          %s408 = smul.addr %s407, 32
          %s409 = scalar_lea.vmem [#allocation7], %s408
          %s410 = smul.u32 2, %s27
          %s412 = ssub.s32 512, 512
          %413 = vsyncadd %s406, %s412
          %s414 = smul.addr %s410, 2
          %s415 = smul.addr %s414, 128
          %s416 = scalar_lea.hbm %s2, %s415
          %s417 = sshll.u32 %s409, 4
          %s418 = int_to_ptr.vmem [resolvable:$true] %s417
          %423 = dma.hbm_to_vmem [thread:$0]  %s416, 512, %s418, %s406, 128, 128, 8
        $region56: #{tpu_custom_call.1} parent=43 // pred_fallthru
          _
      $region44: #{tpu_custom_call.1} parent=5 // pred_fallthru
        _
      %p424 = scmp.le.s32.totalorder 1, %s27
      %p425 = scmp.lt.s32.totalorder %s27, 3
      %p426 = pnand %p424, %p425
      %p427 = pneg %p426
      // Predicated region
      $region57: #{tpu_custom_call.1} parent=5 // pred_check
        _
      $region58: #{tpu_custom_call.1} parent=5 // pred_check_branch
        %429 = sbr.rel (%p426) target = $region60
      $region59: #{tpu_custom_call.1} parent=5 // pred_region
        %s430 = ssub.s32 %s27, 1
        %s431 = sand.u32 %s40, 1
        %s432 = scalar_lea.sflag [#allocation3], %s431
        %s433 = sand.u32 %s40, 1
        %s434 = smul.addr %s433, 32
        %s435 = scalar_lea.vmem [#allocation2], %s434
        // Predicated region
        $region61: #{tpu_custom_call.1} parent=59 // pred_check
          %p436 = pneg %p53
        $region62: #{tpu_custom_call.1} parent=59 // pred_check_branch
          %438 = sbr.rel (%p436) target = $region64
        $region63: #{tpu_custom_call.1} parent=59 // pred_region
          %439 = dma.done %s432, 512
        $region64: #{tpu_custom_call.1} parent=59 // pred_fallthru
          _
        %s440 = sand.u32 %s32, 1
        %s441 = scalar_lea.sflag [#allocation6], %s440
        %s442 = sand.u32 %s66, 1
        %s443 = smul.addr %s442, 32
        %s444 = scalar_lea.vmem [#allocation5], %s443
        // Predicated region
        $region65: #{tpu_custom_call.1} parent=59 // pred_check
          %p445 = pneg %p79
        $region66: #{tpu_custom_call.1} parent=59 // pred_check_branch
          %447 = sbr.rel (%p445) target = $region68
        $region67: #{tpu_custom_call.1} parent=59 // pred_region
          %448 = dma.done %s441, 512
        $region68: #{tpu_custom_call.1} parent=59 // pred_fallthru
          _
        %s449 = sand.u32 %s32, 1
        %s450 = scalar_lea.sflag [#allocation6], %s449
        %s451 = sand.u32 %s92, 1
        %s452 = smul.addr %s451, 32
        %s453 = scalar_lea.vmem [#allocation7], %s452
        // Predicated region
        $region69: #{tpu_custom_call.1} parent=59 // pred_check
          %p454 = pneg %p105
        $region70: #{tpu_custom_call.1} parent=59 // pred_check_branch
          %456 = sbr.rel (%p454) target = $region72
        $region71: #{tpu_custom_call.1} parent=59 // pred_region
          %457 = dma.done %s450, 512
        $region72: #{tpu_custom_call.1} parent=59 // pred_fallthru
          _
        // Predicated region
        $region73: #{tpu_custom_call.1} parent=59 // pred_check
          %p458 = pneg %p126
        $region74: #{tpu_custom_call.1} parent=59 // pred_check_branch
          %460 = sbr.rel (%p458) target = $region76
        $region75: #{tpu_custom_call.1} parent=59 // pred_region
          %461 = dma.done [#allocation9], 1024
        $region76: #{tpu_custom_call.1} parent=59 // pred_fallthru
          _
        // Predicated region
        $region77: #{tpu_custom_call.1} parent=59 // pred_check
          %p462 = pneg %p168
        $region78: #{tpu_custom_call.1} parent=59 // pred_check_branch
          %464 = sbr.rel (%p462) target = $region80
        $region79: #{tpu_custom_call.1} parent=59 // pred_region
          %465 = dma.done [#allocation9], 1024
        $region80: #{tpu_custom_call.1} parent=59 // pred_fallthru
          _
        // Predicated region
        $region81: #{tpu_custom_call.1} parent=59 // pred_check
          %p466 = pneg %p189
        $region82: #{tpu_custom_call.1} parent=59 // pred_check_branch
          %468 = sbr.rel (%p466) target = $region84
        $region83: #{tpu_custom_call.1} parent=59 // pred_region
          %469 = dma.done [#allocation12], 1024
        $region84: #{tpu_custom_call.1} parent=59 // pred_fallthru
          _
        // Predicated region
        $region85: #{tpu_custom_call.1} parent=59 // pred_check
          %p470 = pneg %p231
        $region86: #{tpu_custom_call.1} parent=59 // pred_check_branch
          %472 = sbr.rel (%p470) target = $region88
        $region87: #{tpu_custom_call.1} parent=59 // pred_region
          %473 = dma.done [#allocation12], 1024
        $region88: #{tpu_custom_call.1} parent=59 // pred_fallthru
          _
        %s474 = sand.u32 %s40, 1
        %s475 = scalar_lea.sflag [#allocation3], %s474
        %s476 = sand.u32 %s40, 1
        %s477 = smul.addr %s476, 32
        %s478 = scalar_lea.vmem [#allocation2], %s477
        %p479 = pneg %p53
        %p480 = pneg %p50
        %s481 = sand.u32 %s32, 1
        %s482 = scalar_lea.sflag [#allocation6], %s481
        %s483 = sand.u32 %s66, 1
        %s484 = smul.addr %s483, 32
        %s485 = scalar_lea.vmem [#allocation5], %s484
        %p486 = pneg %p79
        %p487 = pneg %p76
        %s488 = sand.u32 %s32, 1
        %s489 = scalar_lea.sflag [#allocation6], %s488
        %s490 = sand.u32 %s92, 1
        %s491 = smul.addr %s490, 32
        %s492 = scalar_lea.vmem [#allocation7], %s491
        %p493 = pneg %p105
        %p494 = pneg %p102
        %p495 = pneg %p126
        %p496 = pneg %p123
        %p497 = pneg %p147
        %p498 = pneg %p144
        %p499 = pneg %p168
        %p500 = pneg %p165
        %p501 = pneg %p189
        %p502 = pneg %p186
        %p503 = pneg %p210
        %p504 = pneg %p207
        %p505 = pneg %p231
        %p506 = pneg %p228
        %p507 = pneg %p252
        %p508 = pneg %p249
        %p509 = pneg %p278
        %p510 = pneg %p275
        %s511 = sand.u32 %s265, 1
        %s512 = scalar_lea.sflag [#allocation4], %s511
        %s513 = sand.u32 %s265, 1
        %s514 = smul.addr %s513, 32
        %s515 = scalar_lea.vmem [#allocation14], %s514
        %s516 = smul.u32 2, %s32
        %s517 = smul.u32 2, %s32
        %s518 = smul.u32 2, %s32
        %s519 = smul.u32 2, %s32
        %v521 = vld [vmem:[%s435] sm:$0xff]
        %v522 = vld [vmem:[%s435 + $0x8] sm:$0xff]
        %v523 = vld [vmem:[%s435 + $0x10] sm:$0xff]
        %v524 = vld [vmem:[%s435 + $0x18] sm:$0xff]
        %v525 = vpack.c.bf16 %v522, %v521
        %v526 = vpack.c.bf16 %v524, %v523
        %v527 = vld [vmem:[%s444] sm:$0xff]
        %v528 = vld [vmem:[%s444 + $0x8] sm:$0xff]
        %v529 = vld [vmem:[%s444 + $0x10] sm:$0xff]
        %v530 = vld [vmem:[%s444 + $0x18] sm:$0xff]
        %v531 = vpack.c.bf16 %v528, %v527
        %v532 = vpack.c.bf16 %v530, %v529
        %v533 = vld [vmem:[%s453] sm:$0xff]
        %v534 = vld [vmem:[%s453 + $0x8] sm:$0xff]
        %v535 = vld [vmem:[%s453 + $0x10] sm:$0xff]
        %v536 = vld [vmem:[%s453 + $0x18] sm:$0xff]
        %v537 = vpack.c.bf16 %v534, %v533
        %v538 = vpack.c.bf16 %v536, %v535
        %v539 = vld [vmem:[#allocation8] sm:$0xf]
        %v540 = vld [vmem:[#allocation8 + $0x4] sm:$0xf]
        %v541 = vld [vmem:[#allocation8 + $0x8] sm:$0xf]
        %v542 = vld [vmem:[#allocation8 + $0xc] sm:$0xf]
        %v543 = vld [vmem:[#allocation8 + $0x10] sm:$0xf]
        %v544 = vld [vmem:[#allocation8 + $0x14] sm:$0xf]
        %v545 = vld [vmem:[#allocation8 + $0x18] sm:$0xf]
        %v546 = vld [vmem:[#allocation8 + $0x1c] sm:$0xf]
        %v547 = vld [vmem:[#allocation8 + $0x20] sm:$0xf]
        %v548 = vld [vmem:[#allocation8 + $0x24] sm:$0xf]
        %v549 = vld [vmem:[#allocation8 + $0x28] sm:$0xf]
        %v550 = vld [vmem:[#allocation8 + $0x2c] sm:$0xf]
        %v551 = vld [vmem:[#allocation8 + $0x30] sm:$0xf]
        %v552 = vld [vmem:[#allocation8 + $0x34] sm:$0xf]
        %v553 = vld [vmem:[#allocation8 + $0x38] sm:$0xf]
        %v554 = vld [vmem:[#allocation8 + $0x3c] sm:$0xf]
        %v555 = vld [vmem:[%s4] sm:$0x1]
        %v557 = vlaneseq
        %v558 = vshrl.u32 %v557, 7
        %v559 = vsub.s32 0, %v558
        %v560 = vrot.slane %v555, %v559
        %v578 = vunpack.c.l.b16 %v539
        %v579 = vunpack.c.l.b16 %v540
        %v580 = vunpack.c.l.b16 %v541
        %v581 = vunpack.c.l.b16 %v542
        %v582 = vunpack.c.l.b16 %v543
        %v583 = vunpack.c.l.b16 %v544
        %v584 = vunpack.c.l.b16 %v545
        %v585 = vunpack.c.l.b16 %v546
        %v586 = vunpack.c.l.b16 %v547
        %v587 = vunpack.c.l.b16 %v548
        %v588 = vunpack.c.l.b16 %v549
        %v589 = vunpack.c.l.b16 %v550
        %v590 = vunpack.c.l.b16 %v551
        %v591 = vunpack.c.l.b16 %v552
        %v592 = vunpack.c.l.b16 %v553
        %v593 = vunpack.c.l.b16 %v554
        %v594 = vpack.c.b16 %v579, %v578
        %v595 = vpack.c.b16 %v581, %v580
        %v596 = vpack.c.b16 %v583, %v582
        %v597 = vpack.c.b16 %v585, %v584
        %v598 = vpack.c.b16 %v587, %v586
        %v599 = vpack.c.b16 %v589, %v588
        %v600 = vpack.c.b16 %v591, %v590
        %v601 = vpack.c.b16 %v593, %v592
        %610 = vmatprep.subr.bf16.mxu0 0
        %611 = vmatpush1.bf16.msra.mxu0 %v594
        %612 = vmatprep.subr.bf16.mxu0 0
        %613 = vmatpush1.bf16.msra.mxu0 %v595
        %614 = vmatprep.subr.bf16.mxu0 0
        %615 = vmatpush1.bf16.msra.mxu0 %v596
        %616 = vmatprep.subr.bf16.mxu0 0
        %617 = vmatpush1.bf16.msra.mxu0 %v597
        %618 = vmatprep.subr.bf16.mxu0 0
        %619 = vmatpush1.bf16.msra.mxu0 %v598
        %620 = vmatprep.subr.bf16.mxu0 0
        %621 = vmatpush1.bf16.msra.mxu0 %v599
        %622 = vmatprep.subr.bf16.mxu0 0
        %623 = vmatpush1.bf16.msra.mxu0 %v600
        %624 = vmatprep.subr.bf16.mxu0 0
        %625 = vmatpush1.bf16.msra.mxu0 %v601
        %626 = vmatprep.subr.bf16.mxu0 0
        %627 = vmatpush1.bf16.msra.mxu0 0
        %628 = vmatprep.subr.bf16.mxu0 0
        %629 = vmatpush1.bf16.msra.mxu0 0
        %630 = vmatprep.subr.bf16.mxu0 0
        %631 = vmatpush1.bf16.msra.mxu0 0
        %632 = vmatprep.subr.bf16.mxu0 0
        %633 = vmatpush1.bf16.msra.mxu0 0
        %634 = vmatprep.subr.bf16.mxu0 0
        %635 = vmatpush1.bf16.msra.mxu0 0
        %636 = vmatprep.subr.bf16.mxu0 0
        %637 = vmatpush1.bf16.msra.mxu0 0
        %638 = vmatprep.subr.bf16.mxu0 0
        %639 = vmatpush1.bf16.msra.mxu0 0
        %640 = vmatprep.subr.bf16.mxu0 0
        %641 = vmatpush1.bf16.msra.mxu0 0
        %642 = vmatprep.mubr.bf16.mxu0 0
        %643 = vmatmul.mubr.bf16.gmra.mrb[0].mxu0 %v525
        %v644 = vpop.f32.mrb[0].mxu0
        %v645 = vadd.f32 %v560, %v644
        %v646 = vpop.f32.mrb[0].mxu0
        %v647 = vpop.f32.mrb[0].mxu0
        %v648 = vadd.f32 %v560, %v647
        %v649 = vpop.f32.mrb[0].mxu0
        %650 = vmatprep.mubr.bf16.mxu0 0
        %651 = vmatmul.mubr.bf16.gmra.mrb[0].mxu0 %v526
        %v652 = vpop.f32.mrb[0].mxu0
        %v653 = vadd.f32 %v560, %v652
        %v654 = vpop.f32.mrb[0].mxu0
        %v655 = vpop.f32.mrb[0].mxu0
        %v656 = vadd.f32 %v560, %v655
        %v657 = vpop.f32.mrb[0].mxu0
        %658 = vdwg.mxu0
        %v659 = vld [vmem:[#allocation10] sm:$0xf]
        %v660 = vld [vmem:[#allocation10 + $0x4] sm:$0xf]
        %v661 = vld [vmem:[#allocation10 + $0x8] sm:$0xf]
        %v662 = vld [vmem:[#allocation10 + $0xc] sm:$0xf]
        %v663 = vld [vmem:[#allocation10 + $0x10] sm:$0xf]
        %v664 = vld [vmem:[#allocation10 + $0x14] sm:$0xf]
        %v665 = vld [vmem:[#allocation10 + $0x18] sm:$0xf]
        %v666 = vld [vmem:[#allocation10 + $0x1c] sm:$0xf]
        %v667 = vld [vmem:[#allocation10 + $0x20] sm:$0xf]
        %v668 = vld [vmem:[#allocation10 + $0x24] sm:$0xf]
        %v669 = vld [vmem:[#allocation10 + $0x28] sm:$0xf]
        %v670 = vld [vmem:[#allocation10 + $0x2c] sm:$0xf]
        %v671 = vld [vmem:[#allocation10 + $0x30] sm:$0xf]
        %v672 = vld [vmem:[#allocation10 + $0x34] sm:$0xf]
        %v673 = vld [vmem:[#allocation10 + $0x38] sm:$0xf]
        %v674 = vld [vmem:[#allocation10 + $0x3c] sm:$0xf]
        %v691 = vunpack.c.l.b16 %v659
        %v692 = vunpack.c.l.b16 %v660
        %v693 = vunpack.c.l.b16 %v661
        %v694 = vunpack.c.l.b16 %v662
        %v695 = vunpack.c.l.b16 %v663
        %v696 = vunpack.c.l.b16 %v664
        %v697 = vunpack.c.l.b16 %v665
        %v698 = vunpack.c.l.b16 %v666
        %v699 = vunpack.c.l.b16 %v667
        %v700 = vunpack.c.l.b16 %v668
        %v701 = vunpack.c.l.b16 %v669
        %v702 = vunpack.c.l.b16 %v670
        %v703 = vunpack.c.l.b16 %v671
        %v704 = vunpack.c.l.b16 %v672
        %v705 = vunpack.c.l.b16 %v673
        %v706 = vunpack.c.l.b16 %v674
        %v707 = vpack.c.b16 %v692, %v691
        %v708 = vpack.c.b16 %v694, %v693
        %v709 = vpack.c.b16 %v696, %v695
        %v710 = vpack.c.b16 %v698, %v697
        %v711 = vpack.c.b16 %v700, %v699
        %v712 = vpack.c.b16 %v702, %v701
        %v713 = vpack.c.b16 %v704, %v703
        %v714 = vpack.c.b16 %v706, %v705
        %723 = vmatprep.subr.bf16.mxu0 0
        %724 = vmatpush1.bf16.msra.mxu0 %v707
        %725 = vmatprep.subr.bf16.mxu0 0
        %726 = vmatpush1.bf16.msra.mxu0 %v708
        %727 = vmatprep.subr.bf16.mxu0 0
        %728 = vmatpush1.bf16.msra.mxu0 %v709
        %729 = vmatprep.subr.bf16.mxu0 0
        %730 = vmatpush1.bf16.msra.mxu0 %v710
        %731 = vmatprep.subr.bf16.mxu0 0
        %732 = vmatpush1.bf16.msra.mxu0 %v711
        %733 = vmatprep.subr.bf16.mxu0 0
        %734 = vmatpush1.bf16.msra.mxu0 %v712
        %735 = vmatprep.subr.bf16.mxu0 0
        %736 = vmatpush1.bf16.msra.mxu0 %v713
        %737 = vmatprep.subr.bf16.mxu0 0
        %738 = vmatpush1.bf16.msra.mxu0 %v714
        %739 = vmatprep.subr.bf16.mxu0 0
        %740 = vmatpush1.bf16.msra.mxu0 0
        %741 = vmatprep.subr.bf16.mxu0 0
        %742 = vmatpush1.bf16.msra.mxu0 0
        %743 = vmatprep.subr.bf16.mxu0 0
        %744 = vmatpush1.bf16.msra.mxu0 0
        %745 = vmatprep.subr.bf16.mxu0 0
        %746 = vmatpush1.bf16.msra.mxu0 0
        %747 = vmatprep.subr.bf16.mxu0 0
        %748 = vmatpush1.bf16.msra.mxu0 0
        %749 = vmatprep.subr.bf16.mxu0 0
        %750 = vmatpush1.bf16.msra.mxu0 0
        %751 = vmatprep.subr.bf16.mxu0 0
        %752 = vmatpush1.bf16.msra.mxu0 0
        %753 = vmatprep.subr.bf16.mxu0 0
        %754 = vmatpush1.bf16.msra.mxu0 0
        %755 = vmatprep.mubr.bf16.mxu0 0
        %756 = vmatmul.mubr.bf16.gmra.mrb[0].mxu0 %v531
        %v757 = vpop.f32.mrb[0].mxu0
        %v758 = vadd.f32 0.0, %v757
        %v759 = vpop.f32.mrb[0].mxu0
        %v760 = vpop.f32.mrb[0].mxu0
        %v761 = vadd.f32 0.0, %v760
        %v762 = vpop.f32.mrb[0].mxu0
        %763 = vmatprep.mubr.bf16.mxu0 0
        %764 = vmatmul.mubr.bf16.gmra.mrb[0].mxu0 %v532
        %v765 = vpop.f32.mrb[0].mxu0
        %v766 = vadd.f32 0.0, %v765
        %v767 = vpop.f32.mrb[0].mxu0
        %v768 = vpop.f32.mrb[0].mxu0
        %v769 = vadd.f32 0.0, %v768
        %v770 = vpop.f32.mrb[0].mxu0
        %771 = vdwg.mxu0
        %v772 = vld [vmem:[#allocation11] sm:$0xf]
        %v773 = vld [vmem:[#allocation11 + $0x4] sm:$0xf]
        %v774 = vld [vmem:[#allocation11 + $0x8] sm:$0xf]
        %v775 = vld [vmem:[#allocation11 + $0xc] sm:$0xf]
        %v776 = vld [vmem:[#allocation11 + $0x10] sm:$0xf]
        %v777 = vld [vmem:[#allocation11 + $0x14] sm:$0xf]
        %v778 = vld [vmem:[#allocation11 + $0x18] sm:$0xf]
        %v779 = vld [vmem:[#allocation11 + $0x1c] sm:$0xf]
        %v780 = vld [vmem:[#allocation11 + $0x20] sm:$0xf]
        %v781 = vld [vmem:[#allocation11 + $0x24] sm:$0xf]
        %v782 = vld [vmem:[#allocation11 + $0x28] sm:$0xf]
        %v783 = vld [vmem:[#allocation11 + $0x2c] sm:$0xf]
        %v784 = vld [vmem:[#allocation11 + $0x30] sm:$0xf]
        %v785 = vld [vmem:[#allocation11 + $0x34] sm:$0xf]
        %v786 = vld [vmem:[#allocation11 + $0x38] sm:$0xf]
        %v787 = vld [vmem:[#allocation11 + $0x3c] sm:$0xf]
        %v788 = vld [vmem:[%s7] sm:$0x1]
        %v790 = vlaneseq
        %v791 = vshrl.u32 %v790, 7
        %v792 = vsub.s32 0, %v791
        %v793 = vrot.slane %v788, %v792
        %v811 = vunpack.c.l.b16 %v772
        %v812 = vunpack.c.l.b16 %v773
        %v813 = vunpack.c.l.b16 %v774
        %v814 = vunpack.c.l.b16 %v775
        %v815 = vunpack.c.l.b16 %v776
        %v816 = vunpack.c.l.b16 %v777
        %v817 = vunpack.c.l.b16 %v778
        %v818 = vunpack.c.l.b16 %v779
        %v819 = vunpack.c.l.b16 %v780
        %v820 = vunpack.c.l.b16 %v781
        %v821 = vunpack.c.l.b16 %v782
        %v822 = vunpack.c.l.b16 %v783
        %v823 = vunpack.c.l.b16 %v784
        %v824 = vunpack.c.l.b16 %v785
        %v825 = vunpack.c.l.b16 %v786
        %v826 = vunpack.c.l.b16 %v787
        %v827 = vpack.c.b16 %v812, %v811
        %v828 = vpack.c.b16 %v814, %v813
        %v829 = vpack.c.b16 %v816, %v815
        %v830 = vpack.c.b16 %v818, %v817
        %v831 = vpack.c.b16 %v820, %v819
        %v832 = vpack.c.b16 %v822, %v821
        %v833 = vpack.c.b16 %v824, %v823
        %v834 = vpack.c.b16 %v826, %v825
        %843 = vmatprep.subr.bf16.mxu0 0
        %844 = vmatpush1.bf16.msra.mxu0 %v827
        %845 = vmatprep.subr.bf16.mxu0 0
        %846 = vmatpush1.bf16.msra.mxu0 %v828
        %847 = vmatprep.subr.bf16.mxu0 0
        %848 = vmatpush1.bf16.msra.mxu0 %v829
        %849 = vmatprep.subr.bf16.mxu0 0
        %850 = vmatpush1.bf16.msra.mxu0 %v830
        %851 = vmatprep.subr.bf16.mxu0 0
        %852 = vmatpush1.bf16.msra.mxu0 %v831
        %853 = vmatprep.subr.bf16.mxu0 0
        %854 = vmatpush1.bf16.msra.mxu0 %v832
        %855 = vmatprep.subr.bf16.mxu0 0
        %856 = vmatpush1.bf16.msra.mxu0 %v833
        %857 = vmatprep.subr.bf16.mxu0 0
        %858 = vmatpush1.bf16.msra.mxu0 %v834
        %859 = vmatprep.subr.bf16.mxu0 0
        %860 = vmatpush1.bf16.msra.mxu0 0
        %861 = vmatprep.subr.bf16.mxu0 0
        %862 = vmatpush1.bf16.msra.mxu0 0
        %863 = vmatprep.subr.bf16.mxu0 0
        %864 = vmatpush1.bf16.msra.mxu0 0
        %865 = vmatprep.subr.bf16.mxu0 0
        %866 = vmatpush1.bf16.msra.mxu0 0
        %867 = vmatprep.subr.bf16.mxu0 0
        %868 = vmatpush1.bf16.msra.mxu0 0
        %869 = vmatprep.subr.bf16.mxu0 0
        %870 = vmatpush1.bf16.msra.mxu0 0
        %871 = vmatprep.subr.bf16.mxu0 0
        %872 = vmatpush1.bf16.msra.mxu0 0
        %873 = vmatprep.subr.bf16.mxu0 0
        %874 = vmatpush1.bf16.msra.mxu0 0
        %875 = vmatprep.mubr.bf16.mxu0 0
        %876 = vmatmul.mubr.bf16.gmra.mrb[0].mxu0 %v537
        %v877 = vpop.f32.mrb[0].mxu0
        %v878 = vadd.f32 %v793, %v877
        %v879 = vpop.f32.mrb[0].mxu0
        %v880 = vpop.f32.mrb[0].mxu0
        %v881 = vadd.f32 %v793, %v880
        %v882 = vpop.f32.mrb[0].mxu0
        %883 = vmatprep.mubr.bf16.mxu0 0
        %884 = vmatmul.mubr.bf16.gmra.mrb[0].mxu0 %v538
        %v885 = vpop.f32.mrb[0].mxu0
        %v886 = vadd.f32 %v793, %v885
        %v887 = vpop.f32.mrb[0].mxu0
        %v888 = vpop.f32.mrb[0].mxu0
        %v889 = vadd.f32 %v793, %v888
        %v890 = vpop.f32.mrb[0].mxu0
        %891 = vdwg.mxu0
        %v892 = vlaneseq
        %v893 = vshrl.u32 %v892, 7
        %v894 = vadd.s32 %v893, 8
        %v895 = vlaneseq
        %v896 = vand.u32 %v895, 127
        %vm897 = vcmp.gt.s32.totalorder %v896, %v893
        %vm898 = vcmp.gt.s32.totalorder %v896, %v894
        %v899 = vpack.c.bf16 %v648, %v645
        %v900 = vpack.c.bf16 %v656, %v653
        %v901 = vpack.c.bf16 %v761, %v758
        %v902 = vpack.c.bf16 %v769, %v766
        %v903 = vpack.c.bf16 %v881, %v878
        %v904 = vpack.c.bf16 %v889, %v886
        %vm905 = vcmask 261120
        %v907 = vsel %vm905, %v899, 0
        %v910 = vsel %vm905, %v901, 0
        %912 = vmatprep.subr.bf16.mxu0 0
        %913 = vmatpush1.bf16.xpose.msra.mxu0 %v910
        %914 = vmatprep.subr.bf16.mxu0 0
        %915 = vmatpush1.bf16.xpose.msra.mxu0 0
        %916 = vmatprep.subr.bf16.mxu0 0
        %917 = vmatpush1.bf16.xpose.msra.mxu0 0
        %918 = vmatprep.subr.bf16.mxu0 0
        %919 = vmatpush1.bf16.xpose.msra.mxu0 0
        %920 = vmatprep.subr.bf16.mxu0 0
        %921 = vmatpush1.bf16.xpose.msra.mxu0 0
        %922 = vmatprep.subr.bf16.mxu0 0
        %923 = vmatpush1.bf16.xpose.msra.mxu0 0
        %924 = vmatprep.subr.bf16.mxu0 0
        %925 = vmatpush1.bf16.xpose.msra.mxu0 0
        %926 = vmatprep.subr.bf16.mxu0 0
        %927 = vmatpush1.bf16.xpose.msra.mxu0 0
        %928 = vmatprep.subr.bf16.mxu0 0
        %929 = vmatpush1.bf16.xpose.msra.mxu0 0
        %930 = vmatprep.subr.bf16.mxu0 0
        %931 = vmatpush1.bf16.xpose.msra.mxu0 0
        %932 = vmatprep.subr.bf16.mxu0 0
        %933 = vmatpush1.bf16.xpose.msra.mxu0 0
        %934 = vmatprep.subr.bf16.mxu0 0
        %935 = vmatpush1.bf16.xpose.msra.mxu0 0
        %936 = vmatprep.subr.bf16.mxu0 0
        %937 = vmatpush1.bf16.xpose.msra.mxu0 0
        %938 = vmatprep.subr.bf16.mxu0 0
        %939 = vmatpush1.bf16.xpose.msra.mxu0 0
        %940 = vmatprep.subr.bf16.mxu0 0
        %941 = vmatpush1.bf16.xpose.msra.mxu0 0
        %942 = vmatprep.subr.bf16.mxu0 0
        %943 = vmatpush1.bf16.xpose.msra.mxu0 0
        %944 = vmatprep.mubr.bf16.mxu0 0
        %945 = vmatmul.mubr.bf16.gmra.mrb[0].mxu0 %v907
        %v946 = vpop.f32.mrb[0].mxu0
        %v947 = vadd.f32 0.0, %v946
        %v948 = vpop.f32.mrb[0].mxu0
        %v949 = vpop.f32.mrb[0].mxu0
        %v950 = vadd.f32 0.0, %v949
        %v951 = vpop.f32.mrb[0].mxu0
        %952 = vdwg.mxu0
        %v954 = vsel %vm905, %v900, 0
        %v957 = vsel %vm905, %v902, 0
        %959 = vmatprep.subr.bf16.mxu0 0
        %960 = vmatpush1.bf16.xpose.msra.mxu0 %v957
        %961 = vmatprep.subr.bf16.mxu0 0
        %962 = vmatpush1.bf16.xpose.msra.mxu0 0
        %963 = vmatprep.subr.bf16.mxu0 0
        %964 = vmatpush1.bf16.xpose.msra.mxu0 0
        %965 = vmatprep.subr.bf16.mxu0 0
        %966 = vmatpush1.bf16.xpose.msra.mxu0 0
        %967 = vmatprep.subr.bf16.mxu0 0
        %968 = vmatpush1.bf16.xpose.msra.mxu0 0
        %969 = vmatprep.subr.bf16.mxu0 0
        %970 = vmatpush1.bf16.xpose.msra.mxu0 0
        %971 = vmatprep.subr.bf16.mxu0 0
        %972 = vmatpush1.bf16.xpose.msra.mxu0 0
        %973 = vmatprep.subr.bf16.mxu0 0
        %974 = vmatpush1.bf16.xpose.msra.mxu0 0
        %975 = vmatprep.subr.bf16.mxu0 0
        %976 = vmatpush1.bf16.xpose.msra.mxu0 0
        %977 = vmatprep.subr.bf16.mxu0 0
        %978 = vmatpush1.bf16.xpose.msra.mxu0 0
        %979 = vmatprep.subr.bf16.mxu0 0
        %980 = vmatpush1.bf16.xpose.msra.mxu0 0
        %981 = vmatprep.subr.bf16.mxu0 0
        %982 = vmatpush1.bf16.xpose.msra.mxu0 0
        %983 = vmatprep.subr.bf16.mxu0 0
        %984 = vmatpush1.bf16.xpose.msra.mxu0 0
        %985 = vmatprep.subr.bf16.mxu0 0
        %986 = vmatpush1.bf16.xpose.msra.mxu0 0
        %987 = vmatprep.subr.bf16.mxu0 0
        %988 = vmatpush1.bf16.xpose.msra.mxu0 0
        %989 = vmatprep.subr.bf16.mxu0 0
        %990 = vmatpush1.bf16.xpose.msra.mxu0 0
        %991 = vmatprep.mubr.bf16.mxu0 0
        %992 = vmatmul.mubr.bf16.gmra.mrb[0].mxu0 %v954
        %v993 = vpop.f32.mrb[0].mxu0
        %v994 = vadd.f32 0.0, %v993
        %v995 = vpop.f32.mrb[0].mxu0
        %v996 = vpop.f32.mrb[0].mxu0
        %v997 = vadd.f32 0.0, %v996
        %v998 = vpop.f32.mrb[0].mxu0
        %999 = vdwg.mxu0
        %v1000 = vsel %vm897, 1, 0
        %v1001 = vsel %vm898, 1, 0
        %vm1002 = vcmp.eq.s32.totalorder %v1000, 1
        %vm1003 = vcmp.eq.s32.totalorder %v1001, 1
        %v1004 = vsel %vm1002, -1e+09, %v947
        %v1005 = vsel %vm1003, -1e+09, %v950
        %v1006 = vsel %vm1002, -1e+09, %v994
        %v1007 = vsel %vm1003, -1e+09, %v997
        %vm1008 = vcmask 130048
        %v1009 = vsel %vm1008, %v1004, -inf
        %1010 = vmax.xlane.f32.xlu0 %v1009
        %v1011 = vpop.xlane.xlu0 %1010
        %v1012 = vsel %vm1008, %v1005, -inf
        %1013 = vmax.xlane.f32.xlu0 %v1012
        %v1014 = vpop.xlane.xlu0 %1013
        %v1015 = vsel %vm1008, %v1006, -inf
        %1016 = vmax.xlane.f32.xlu0 %v1015
        %v1017 = vpop.xlane.xlu0 %1016
        %v1018 = vsel %vm1008, %v1007, -inf
        %1019 = vmax.xlane.f32.xlu0 %v1018
        %v1020 = vpop.xlane.xlu0 %1019
        %v1021 = vsub.f32 %v1004, %v1011
        %v1022 = vsub.f32 %v1005, %v1014
        %v1023 = vsub.f32 %v1006, %v1017
        %v1024 = vsub.f32 %v1007, %v1020
        %v1025 = vmul.f32 %v1021, 1.442695
        %v1026 = vpow.pop %v1025
        %v1027 = vmul.f32 %v1022, 1.442695
        %v1028 = vpow.pop %v1027
        %v1029 = vmul.f32 %v1023, 1.442695
        %v1030 = vpow.pop %v1029
        %v1031 = vmul.f32 %v1024, 1.442695
        %v1032 = vpow.pop %v1031
        %v1033 = vsel %vm1008, %v1026, 0.0
        %1034 = vadd.xlane.f32.xlu0 %v1033
        %v1035 = vpop.xlane.xlu0 %1034
        %v1036 = vsel %vm1008, %v1028, 0.0
        %1037 = vadd.xlane.f32.xlu0 %v1036
        %v1038 = vpop.xlane.xlu0 %1037
        %v1039 = vsel %vm1008, %v1030, 0.0
        %1040 = vadd.xlane.f32.xlu0 %v1039
        %v1041 = vpop.xlane.xlu0 %1040
        %v1042 = vsel %vm1008, %v1032, 0.0
        %1043 = vadd.xlane.f32.xlu0 %v1042
        %v1044 = vpop.xlane.xlu0 %1043
        %v1045 = vrcp.pop %v1035
        %v1046 = vrcp.pop %v1038
        %v1047 = vrcp.pop %v1041
        %v1048 = vrcp.pop %v1044
        %v1049 = vmul.f32 %v1035, %v1045
        %v1050 = vmul.f32 %v1038, %v1046
        %v1051 = vmul.f32 %v1041, %v1047
        %v1052 = vmul.f32 %v1044, %v1048
        %v1053 = vsub.f32 2.0, %v1049
        %v1054 = vsub.f32 2.0, %v1050
        %v1055 = vsub.f32 2.0, %v1051
        %v1056 = vsub.f32 2.0, %v1052
        %v1057 = vmul.f32 %v1045, %v1053
        %v1058 = vmul.f32 %v1046, %v1054
        %v1059 = vmul.f32 %v1047, %v1055
        %v1060 = vmul.f32 %v1048, %v1056
        %v1061 = vpack.c.bf16 %v1028, %v1026
        %v1062 = vpack.c.bf16 %v1032, %v1030
        %v1064 = vsel %vm1008, %v1061, 0
        %1066 = vmatprep.subr.bf16.mxu0 0
        %1067 = vmatpush1.bf16.msra.mxu0 %v903
        %1068 = vmatprep.subr.bf16.mxu0 0
        %1069 = vmatpush1.bf16.msra.mxu0 0
        %1070 = vmatprep.subr.bf16.mxu0 0
        %1071 = vmatpush1.bf16.msra.mxu0 0
        %1072 = vmatprep.subr.bf16.mxu0 0
        %1073 = vmatpush1.bf16.msra.mxu0 0
        %1074 = vmatprep.subr.bf16.mxu0 0
        %1075 = vmatpush1.bf16.msra.mxu0 0
        %1076 = vmatprep.subr.bf16.mxu0 0
        %1077 = vmatpush1.bf16.msra.mxu0 0
        %1078 = vmatprep.subr.bf16.mxu0 0
        %1079 = vmatpush1.bf16.msra.mxu0 0
        %1080 = vmatprep.subr.bf16.mxu0 0
        %1081 = vmatpush1.bf16.msra.mxu0 0
        %1082 = vmatprep.subr.bf16.mxu0 0
        %1083 = vmatpush1.bf16.msra.mxu0 0
        %1084 = vmatprep.subr.bf16.mxu0 0
        %1085 = vmatpush1.bf16.msra.mxu0 0
        %1086 = vmatprep.subr.bf16.mxu0 0
        %1087 = vmatpush1.bf16.msra.mxu0 0
        %1088 = vmatprep.subr.bf16.mxu0 0
        %1089 = vmatpush1.bf16.msra.mxu0 0
        %1090 = vmatprep.subr.bf16.mxu0 0
        %1091 = vmatpush1.bf16.msra.mxu0 0
        %1092 = vmatprep.subr.bf16.mxu0 0
        %1093 = vmatpush1.bf16.msra.mxu0 0
        %1094 = vmatprep.subr.bf16.mxu0 0
        %1095 = vmatpush1.bf16.msra.mxu0 0
        %1096 = vmatprep.subr.bf16.mxu0 0
        %1097 = vmatpush1.bf16.msra.mxu0 0
        %1098 = vmatprep.mubr.bf16.mxu0 0
        %1099 = vmatmul.mubr.bf16.gmra.mrb[0].mxu0 %v1064
        %v1100 = vpop.f32.mrb[0].mxu0
        %v1101 = vadd.f32 0.0, %v1100
        %v1102 = vpop.f32.mrb[0].mxu0
        %v1103 = vpop.f32.mrb[0].mxu0
        %v1104 = vadd.f32 0.0, %v1103
        %v1105 = vpop.f32.mrb[0].mxu0
        %1106 = vdwg.mxu0
        %v1108 = vsel %vm1008, %v1062, 0
        %1110 = vmatprep.subr.bf16.mxu0 0
        %1111 = vmatpush1.bf16.msra.mxu0 %v904
        %1112 = vmatprep.subr.bf16.mxu0 0
        %1113 = vmatpush1.bf16.msra.mxu0 0
        %1114 = vmatprep.subr.bf16.mxu0 0
        %1115 = vmatpush1.bf16.msra.mxu0 0
        %1116 = vmatprep.subr.bf16.mxu0 0
        %1117 = vmatpush1.bf16.msra.mxu0 0
        %1118 = vmatprep.subr.bf16.mxu0 0
        %1119 = vmatpush1.bf16.msra.mxu0 0
        %1120 = vmatprep.subr.bf16.mxu0 0
        %1121 = vmatpush1.bf16.msra.mxu0 0
        %1122 = vmatprep.subr.bf16.mxu0 0
        %1123 = vmatpush1.bf16.msra.mxu0 0
        %1124 = vmatprep.subr.bf16.mxu0 0
        %1125 = vmatpush1.bf16.msra.mxu0 0
        %1126 = vmatprep.subr.bf16.mxu0 0
        %1127 = vmatpush1.bf16.msra.mxu0 0
        %1128 = vmatprep.subr.bf16.mxu0 0
        %1129 = vmatpush1.bf16.msra.mxu0 0
        %1130 = vmatprep.subr.bf16.mxu0 0
        %1131 = vmatpush1.bf16.msra.mxu0 0
        %1132 = vmatprep.subr.bf16.mxu0 0
        %1133 = vmatpush1.bf16.msra.mxu0 0
        %1134 = vmatprep.subr.bf16.mxu0 0
        %1135 = vmatpush1.bf16.msra.mxu0 0
        %1136 = vmatprep.subr.bf16.mxu0 0
        %1137 = vmatpush1.bf16.msra.mxu0 0
        %1138 = vmatprep.subr.bf16.mxu0 0
        %1139 = vmatpush1.bf16.msra.mxu0 0
        %1140 = vmatprep.subr.bf16.mxu0 0
        %1141 = vmatpush1.bf16.msra.mxu0 0
        %1142 = vmatprep.mubr.bf16.mxu0 0
        %1143 = vmatmul.mubr.bf16.gmra.mrb[0].mxu0 %v1108
        %v1144 = vpop.f32.mrb[0].mxu0
        %v1145 = vadd.f32 0.0, %v1144
        %v1146 = vpop.f32.mrb[0].mxu0
        %v1147 = vpop.f32.mrb[0].mxu0
        %v1148 = vadd.f32 0.0, %v1147
        %v1149 = vpop.f32.mrb[0].mxu0
        %1150 = vdwg.mxu0
        %v1151 = vmul.f32 %v1101, %v1057
        %v1152 = vmul.f32 %v1104, %v1058
        %v1153 = vmul.f32 %v1145, %v1059
        %v1154 = vmul.f32 %v1148, %v1060
        %1156 = vrot.lane.b32.xlu0 %v899, 96
        %v1157 = vpop.permute.xlu0 %1156
        %1159 = vrot.lane.b32.xlu0 %v901, 96
        %v1160 = vpop.permute.xlu0 %1159
        %v1162 = vsel %vm905, %v1157, 0
        %v1165 = vsel %vm905, %v1160, 0
        %1167 = vmatprep.subr.bf16.mxu0 0
        %1168 = vmatpush1.bf16.xpose.msra.mxu0 %v1165
        %1169 = vmatprep.subr.bf16.mxu0 0
        %1170 = vmatpush1.bf16.xpose.msra.mxu0 0
        %1171 = vmatprep.subr.bf16.mxu0 0
        %1172 = vmatpush1.bf16.xpose.msra.mxu0 0
        %1173 = vmatprep.subr.bf16.mxu0 0
        %1174 = vmatpush1.bf16.xpose.msra.mxu0 0
        %1175 = vmatprep.subr.bf16.mxu0 0
        %1176 = vmatpush1.bf16.xpose.msra.mxu0 0
        %1177 = vmatprep.subr.bf16.mxu0 0
        %1178 = vmatpush1.bf16.xpose.msra.mxu0 0
        %1179 = vmatprep.subr.bf16.mxu0 0
        %1180 = vmatpush1.bf16.xpose.msra.mxu0 0
        %1181 = vmatprep.subr.bf16.mxu0 0
        %1182 = vmatpush1.bf16.xpose.msra.mxu0 0
        %1183 = vmatprep.subr.bf16.mxu0 0
        %1184 = vmatpush1.bf16.xpose.msra.mxu0 0
        %1185 = vmatprep.subr.bf16.mxu0 0
        %1186 = vmatpush1.bf16.xpose.msra.mxu0 0
        %1187 = vmatprep.subr.bf16.mxu0 0
        %1188 = vmatpush1.bf16.xpose.msra.mxu0 0
        %1189 = vmatprep.subr.bf16.mxu0 0
        %1190 = vmatpush1.bf16.xpose.msra.mxu0 0
        %1191 = vmatprep.subr.bf16.mxu0 0
        %1192 = vmatpush1.bf16.xpose.msra.mxu0 0
        %1193 = vmatprep.subr.bf16.mxu0 0
        %1194 = vmatpush1.bf16.xpose.msra.mxu0 0
        %1195 = vmatprep.subr.bf16.mxu0 0
        %1196 = vmatpush1.bf16.xpose.msra.mxu0 0
        %1197 = vmatprep.subr.bf16.mxu0 0
        %1198 = vmatpush1.bf16.xpose.msra.mxu0 0
        %1199 = vmatprep.mubr.bf16.mxu0 0
        %1200 = vmatmul.mubr.bf16.gmra.mrb[0].mxu0 %v1162
        %v1201 = vpop.f32.mrb[0].mxu0
        %v1202 = vadd.f32 0.0, %v1201
        %v1203 = vpop.f32.mrb[0].mxu0
        %v1204 = vpop.f32.mrb[0].mxu0
        %v1205 = vadd.f32 0.0, %v1204
        %v1206 = vpop.f32.mrb[0].mxu0
        %1207 = vdwg.mxu0
        %1209 = vrot.lane.b32.xlu0 %v900, 96
        %v1210 = vpop.permute.xlu0 %1209
        %1212 = vrot.lane.b32.xlu0 %v902, 96
        %v1213 = vpop.permute.xlu0 %1212
        %v1215 = vsel %vm905, %v1210, 0
        %v1218 = vsel %vm905, %v1213, 0
        %1220 = vmatprep.subr.bf16.mxu0 0
        %1221 = vmatpush1.bf16.xpose.msra.mxu0 %v1218
        %1222 = vmatprep.subr.bf16.mxu0 0
        %1223 = vmatpush1.bf16.xpose.msra.mxu0 0
        %1224 = vmatprep.subr.bf16.mxu0 0
        %1225 = vmatpush1.bf16.xpose.msra.mxu0 0
        %1226 = vmatprep.subr.bf16.mxu0 0
        %1227 = vmatpush1.bf16.xpose.msra.mxu0 0
        %1228 = vmatprep.subr.bf16.mxu0 0
        %1229 = vmatpush1.bf16.xpose.msra.mxu0 0
        %1230 = vmatprep.subr.bf16.mxu0 0
        %1231 = vmatpush1.bf16.xpose.msra.mxu0 0
        %1232 = vmatprep.subr.bf16.mxu0 0
        %1233 = vmatpush1.bf16.xpose.msra.mxu0 0
        %1234 = vmatprep.subr.bf16.mxu0 0
        %1235 = vmatpush1.bf16.xpose.msra.mxu0 0
        %1236 = vmatprep.subr.bf16.mxu0 0
        %1237 = vmatpush1.bf16.xpose.msra.mxu0 0
        %1238 = vmatprep.subr.bf16.mxu0 0
        %1239 = vmatpush1.bf16.xpose.msra.mxu0 0
        %1240 = vmatprep.subr.bf16.mxu0 0
        %1241 = vmatpush1.bf16.xpose.msra.mxu0 0
        %1242 = vmatprep.subr.bf16.mxu0 0
        %1243 = vmatpush1.bf16.xpose.msra.mxu0 0
        %1244 = vmatprep.subr.bf16.mxu0 0
        %1245 = vmatpush1.bf16.xpose.msra.mxu0 0
        %1246 = vmatprep.subr.bf16.mxu0 0
        %1247 = vmatpush1.bf16.xpose.msra.mxu0 0
        %1248 = vmatprep.subr.bf16.mxu0 0
        %1249 = vmatpush1.bf16.xpose.msra.mxu0 0
        %1250 = vmatprep.subr.bf16.mxu0 0
        %1251 = vmatpush1.bf16.xpose.msra.mxu0 0
        %1252 = vmatprep.mubr.bf16.mxu0 0
        %1253 = vmatmul.mubr.bf16.gmra.mrb[0].mxu0 %v1215
        %v1254 = vpop.f32.mrb[0].mxu0
        %v1255 = vadd.f32 0.0, %v1254
        %v1256 = vpop.f32.mrb[0].mxu0
        %v1257 = vpop.f32.mrb[0].mxu0
        %v1258 = vadd.f32 0.0, %v1257
        %v1259 = vpop.f32.mrb[0].mxu0
        %1260 = vdwg.mxu0
        %v1261 = vsel %vm1002, -1e+09, %v1202
        %v1262 = vsel %vm1003, -1e+09, %v1205
        %v1263 = vsel %vm1002, -1e+09, %v1255
        %v1264 = vsel %vm1003, -1e+09, %v1258
        %v1265 = vsel %vm1008, %v1261, -inf
        %1266 = vmax.xlane.f32.xlu0 %v1265
        %v1267 = vpop.xlane.xlu0 %1266
        %v1268 = vsel %vm1008, %v1262, -inf
        %1269 = vmax.xlane.f32.xlu0 %v1268
        %v1270 = vpop.xlane.xlu0 %1269
        %v1271 = vsel %vm1008, %v1263, -inf
        %1272 = vmax.xlane.f32.xlu0 %v1271
        %v1273 = vpop.xlane.xlu0 %1272
        %v1274 = vsel %vm1008, %v1264, -inf
        %1275 = vmax.xlane.f32.xlu0 %v1274
        %v1276 = vpop.xlane.xlu0 %1275
        %v1277 = vsub.f32 %v1261, %v1267
        %v1278 = vsub.f32 %v1262, %v1270
        %v1279 = vsub.f32 %v1263, %v1273
        %v1280 = vsub.f32 %v1264, %v1276
        %v1281 = vmul.f32 %v1277, 1.442695
        %v1282 = vpow.pop %v1281
        %v1283 = vmul.f32 %v1278, 1.442695
        %v1284 = vpow.pop %v1283
        %v1285 = vmul.f32 %v1279, 1.442695
        %v1286 = vpow.pop %v1285
        %v1287 = vmul.f32 %v1280, 1.442695
        %v1288 = vpow.pop %v1287
        %v1289 = vsel %vm1008, %v1282, 0.0
        %1290 = vadd.xlane.f32.xlu0 %v1289
        %v1291 = vpop.xlane.xlu0 %1290
        %v1292 = vsel %vm1008, %v1284, 0.0
        %1293 = vadd.xlane.f32.xlu0 %v1292
        %v1294 = vpop.xlane.xlu0 %1293
        %v1295 = vsel %vm1008, %v1286, 0.0
        %1296 = vadd.xlane.f32.xlu0 %v1295
        %v1297 = vpop.xlane.xlu0 %1296
        %v1298 = vsel %vm1008, %v1288, 0.0
        %1299 = vadd.xlane.f32.xlu0 %v1298
        %v1300 = vpop.xlane.xlu0 %1299
        %v1301 = vrcp.pop %v1291
        %v1302 = vrcp.pop %v1294
        %v1303 = vrcp.pop %v1297
        %v1304 = vrcp.pop %v1300
        %v1305 = vmul.f32 %v1291, %v1301
        %v1306 = vmul.f32 %v1294, %v1302
        %v1307 = vmul.f32 %v1297, %v1303
        %v1308 = vmul.f32 %v1300, %v1304
        %v1309 = vsub.f32 2.0, %v1305
        %v1310 = vsub.f32 2.0, %v1306
        %v1311 = vsub.f32 2.0, %v1307
        %v1312 = vsub.f32 2.0, %v1308
        %v1313 = vmul.f32 %v1301, %v1309
        %v1314 = vmul.f32 %v1302, %v1310
        %v1315 = vmul.f32 %v1303, %v1311
        %v1316 = vmul.f32 %v1304, %v1312
        %v1317 = vpack.c.bf16 %v1284, %v1282
        %v1318 = vpack.c.bf16 %v1288, %v1286
        %1320 = vrot.lane.b32.xlu0 %v903, 96
        %v1321 = vpop.permute.xlu0 %1320
        %v1324 = vsel %vm1008, %v1317, 0
        %1326 = vmatprep.subr.bf16.mxu0 0
        %1327 = vmatpush1.bf16.msra.mxu0 %v1321
        %1328 = vmatprep.subr.bf16.mxu0 0
        %1329 = vmatpush1.bf16.msra.mxu0 0
        %1330 = vmatprep.subr.bf16.mxu0 0
        %1331 = vmatpush1.bf16.msra.mxu0 0
        %1332 = vmatprep.subr.bf16.mxu0 0
        %1333 = vmatpush1.bf16.msra.mxu0 0
        %1334 = vmatprep.subr.bf16.mxu0 0
        %1335 = vmatpush1.bf16.msra.mxu0 0
        %1336 = vmatprep.subr.bf16.mxu0 0
        %1337 = vmatpush1.bf16.msra.mxu0 0
        %1338 = vmatprep.subr.bf16.mxu0 0
        %1339 = vmatpush1.bf16.msra.mxu0 0
        %1340 = vmatprep.subr.bf16.mxu0 0
        %1341 = vmatpush1.bf16.msra.mxu0 0
        %1342 = vmatprep.subr.bf16.mxu0 0
        %1343 = vmatpush1.bf16.msra.mxu0 0
        %1344 = vmatprep.subr.bf16.mxu0 0
        %1345 = vmatpush1.bf16.msra.mxu0 0
        %1346 = vmatprep.subr.bf16.mxu0 0
        %1347 = vmatpush1.bf16.msra.mxu0 0
        %1348 = vmatprep.subr.bf16.mxu0 0
        %1349 = vmatpush1.bf16.msra.mxu0 0
        %1350 = vmatprep.subr.bf16.mxu0 0
        %1351 = vmatpush1.bf16.msra.mxu0 0
        %1352 = vmatprep.subr.bf16.mxu0 0
        %1353 = vmatpush1.bf16.msra.mxu0 0
        %1354 = vmatprep.subr.bf16.mxu0 0
        %1355 = vmatpush1.bf16.msra.mxu0 0
        %1356 = vmatprep.subr.bf16.mxu0 0
        %1357 = vmatpush1.bf16.msra.mxu0 0
        %1358 = vmatprep.mubr.bf16.mxu0 0
        %1359 = vmatmul.mubr.bf16.gmra.mrb[0].mxu0 %v1324
        %v1360 = vpop.f32.mrb[0].mxu0
        %v1361 = vadd.f32 0.0, %v1360
        %v1362 = vpop.f32.mrb[0].mxu0
        %v1363 = vpop.f32.mrb[0].mxu0
        %v1364 = vadd.f32 0.0, %v1363
        %v1365 = vpop.f32.mrb[0].mxu0
        %1366 = vdwg.mxu0
        %1368 = vrot.lane.b32.xlu0 %v904, 96
        %v1369 = vpop.permute.xlu0 %1368
        %v1372 = vsel %vm1008, %v1318, 0
        %1374 = vmatprep.subr.bf16.mxu0 0
        %1375 = vmatpush1.bf16.msra.mxu0 %v1369
        %1376 = vmatprep.subr.bf16.mxu0 0
        %1377 = vmatpush1.bf16.msra.mxu0 0
        %1378 = vmatprep.subr.bf16.mxu0 0
        %1379 = vmatpush1.bf16.msra.mxu0 0
        %1380 = vmatprep.subr.bf16.mxu0 0
        %1381 = vmatpush1.bf16.msra.mxu0 0
        %1382 = vmatprep.subr.bf16.mxu0 0
        %1383 = vmatpush1.bf16.msra.mxu0 0
        %1384 = vmatprep.subr.bf16.mxu0 0
        %1385 = vmatpush1.bf16.msra.mxu0 0
        %1386 = vmatprep.subr.bf16.mxu0 0
        %1387 = vmatpush1.bf16.msra.mxu0 0
        %1388 = vmatprep.subr.bf16.mxu0 0
        %1389 = vmatpush1.bf16.msra.mxu0 0
        %1390 = vmatprep.subr.bf16.mxu0 0
        %1391 = vmatpush1.bf16.msra.mxu0 0
        %1392 = vmatprep.subr.bf16.mxu0 0
        %1393 = vmatpush1.bf16.msra.mxu0 0
        %1394 = vmatprep.subr.bf16.mxu0 0
        %1395 = vmatpush1.bf16.msra.mxu0 0
        %1396 = vmatprep.subr.bf16.mxu0 0
        %1397 = vmatpush1.bf16.msra.mxu0 0
        %1398 = vmatprep.subr.bf16.mxu0 0
        %1399 = vmatpush1.bf16.msra.mxu0 0
        %1400 = vmatprep.subr.bf16.mxu0 0
        %1401 = vmatpush1.bf16.msra.mxu0 0
        %1402 = vmatprep.subr.bf16.mxu0 0
        %1403 = vmatpush1.bf16.msra.mxu0 0
        %1404 = vmatprep.subr.bf16.mxu0 0
        %1405 = vmatpush1.bf16.msra.mxu0 0
        %1406 = vmatprep.mubr.bf16.mxu0 0
        %1407 = vmatmul.mubr.bf16.gmra.mrb[0].mxu0 %v1372
        %v1408 = vpop.f32.mrb[0].mxu0
        %v1409 = vadd.f32 0.0, %v1408
        %v1410 = vpop.f32.mrb[0].mxu0
        %v1411 = vpop.f32.mrb[0].mxu0
        %v1412 = vadd.f32 0.0, %v1411
        %v1413 = vpop.f32.mrb[0].mxu0
        %1414 = vdwg.mxu0
        %v1415 = vmul.f32 %v1361, %v1313
        %v1416 = vmul.f32 %v1364, %v1314
        %v1417 = vmul.f32 %v1409, %v1315
        %v1418 = vmul.f32 %v1412, %v1316
        %1419 = vrot.lane.b32.xlu0 %v899, 64
        %v1420 = vpop.permute.xlu0 %1419
        %1421 = vrot.lane.b32.xlu0 %v901, 64
        %v1422 = vpop.permute.xlu0 %1421
        %v1424 = vsel %vm905, %v1420, 0
        %v1427 = vsel %vm905, %v1422, 0
        %1429 = vmatprep.subr.bf16.mxu0 0
        %1430 = vmatpush1.bf16.xpose.msra.mxu0 %v1427
        %1431 = vmatprep.subr.bf16.mxu0 0
        %1432 = vmatpush1.bf16.xpose.msra.mxu0 0
        %1433 = vmatprep.subr.bf16.mxu0 0
        %1434 = vmatpush1.bf16.xpose.msra.mxu0 0
        %1435 = vmatprep.subr.bf16.mxu0 0
        %1436 = vmatpush1.bf16.xpose.msra.mxu0 0
        %1437 = vmatprep.subr.bf16.mxu0 0
        %1438 = vmatpush1.bf16.xpose.msra.mxu0 0
        %1439 = vmatprep.subr.bf16.mxu0 0
        %1440 = vmatpush1.bf16.xpose.msra.mxu0 0
        %1441 = vmatprep.subr.bf16.mxu0 0
        %1442 = vmatpush1.bf16.xpose.msra.mxu0 0
        %1443 = vmatprep.subr.bf16.mxu0 0
        %1444 = vmatpush1.bf16.xpose.msra.mxu0 0
        %1445 = vmatprep.subr.bf16.mxu0 0
        %1446 = vmatpush1.bf16.xpose.msra.mxu0 0
        %1447 = vmatprep.subr.bf16.mxu0 0
        %1448 = vmatpush1.bf16.xpose.msra.mxu0 0
        %1449 = vmatprep.subr.bf16.mxu0 0
        %1450 = vmatpush1.bf16.xpose.msra.mxu0 0
        %1451 = vmatprep.subr.bf16.mxu0 0
        %1452 = vmatpush1.bf16.xpose.msra.mxu0 0
        %1453 = vmatprep.subr.bf16.mxu0 0
        %1454 = vmatpush1.bf16.xpose.msra.mxu0 0
        %1455 = vmatprep.subr.bf16.mxu0 0
        %1456 = vmatpush1.bf16.xpose.msra.mxu0 0
        %1457 = vmatprep.subr.bf16.mxu0 0
        %1458 = vmatpush1.bf16.xpose.msra.mxu0 0
        %1459 = vmatprep.subr.bf16.mxu0 0
        %1460 = vmatpush1.bf16.xpose.msra.mxu0 0
        %1461 = vmatprep.mubr.bf16.mxu0 0
        %1462 = vmatmul.mubr.bf16.gmra.mrb[0].mxu0 %v1424
        %v1463 = vpop.f32.mrb[0].mxu0
        %v1464 = vadd.f32 0.0, %v1463
        %v1465 = vpop.f32.mrb[0].mxu0
        %v1466 = vpop.f32.mrb[0].mxu0
        %v1467 = vadd.f32 0.0, %v1466
        %v1468 = vpop.f32.mrb[0].mxu0
        %1469 = vdwg.mxu0
        %1470 = vrot.lane.b32.xlu0 %v900, 64
        %v1471 = vpop.permute.xlu0 %1470
        %1472 = vrot.lane.b32.xlu0 %v902, 64
        %v1473 = vpop.permute.xlu0 %1472
        %v1475 = vsel %vm905, %v1471, 0
        %v1478 = vsel %vm905, %v1473, 0
        %1480 = vmatprep.subr.bf16.mxu0 0
        %1481 = vmatpush1.bf16.xpose.msra.mxu0 %v1478
        %1482 = vmatprep.subr.bf16.mxu0 0
        %1483 = vmatpush1.bf16.xpose.msra.mxu0 0
        %1484 = vmatprep.subr.bf16.mxu0 0
        %1485 = vmatpush1.bf16.xpose.msra.mxu0 0
        %1486 = vmatprep.subr.bf16.mxu0 0
        %1487 = vmatpush1.bf16.xpose.msra.mxu0 0
        %1488 = vmatprep.subr.bf16.mxu0 0
        %1489 = vmatpush1.bf16.xpose.msra.mxu0 0
        %1490 = vmatprep.subr.bf16.mxu0 0
        %1491 = vmatpush1.bf16.xpose.msra.mxu0 0
        %1492 = vmatprep.subr.bf16.mxu0 0
        %1493 = vmatpush1.bf16.xpose.msra.mxu0 0
        %1494 = vmatprep.subr.bf16.mxu0 0
        %1495 = vmatpush1.bf16.xpose.msra.mxu0 0
        %1496 = vmatprep.subr.bf16.mxu0 0
        %1497 = vmatpush1.bf16.xpose.msra.mxu0 0
        %1498 = vmatprep.subr.bf16.mxu0 0
        %1499 = vmatpush1.bf16.xpose.msra.mxu0 0
        %1500 = vmatprep.subr.bf16.mxu0 0
        %1501 = vmatpush1.bf16.xpose.msra.mxu0 0
        %1502 = vmatprep.subr.bf16.mxu0 0
        %1503 = vmatpush1.bf16.xpose.msra.mxu0 0
        %1504 = vmatprep.subr.bf16.mxu0 0
        %1505 = vmatpush1.bf16.xpose.msra.mxu0 0
        %1506 = vmatprep.subr.bf16.mxu0 0
        %1507 = vmatpush1.bf16.xpose.msra.mxu0 0
        %1508 = vmatprep.subr.bf16.mxu0 0
        %1509 = vmatpush1.bf16.xpose.msra.mxu0 0
        %1510 = vmatprep.subr.bf16.mxu0 0
        %1511 = vmatpush1.bf16.xpose.msra.mxu0 0
        %1512 = vmatprep.mubr.bf16.mxu0 0
        %1513 = vmatmul.mubr.bf16.gmra.mrb[0].mxu0 %v1475
        %v1514 = vpop.f32.mrb[0].mxu0
        %v1515 = vadd.f32 0.0, %v1514
        %v1516 = vpop.f32.mrb[0].mxu0
        %v1517 = vpop.f32.mrb[0].mxu0
        %v1518 = vadd.f32 0.0, %v1517
        %v1519 = vpop.f32.mrb[0].mxu0
        %1520 = vdwg.mxu0
        %v1521 = vsel %vm1002, -1e+09, %v1464
        %v1522 = vsel %vm1003, -1e+09, %v1467
        %v1523 = vsel %vm1002, -1e+09, %v1515
        %v1524 = vsel %vm1003, -1e+09, %v1518
        %v1525 = vsel %vm1008, %v1521, -inf
        %1526 = vmax.xlane.f32.xlu0 %v1525
        %v1527 = vpop.xlane.xlu0 %1526
        %v1528 = vsel %vm1008, %v1522, -inf
        %1529 = vmax.xlane.f32.xlu0 %v1528
        %v1530 = vpop.xlane.xlu0 %1529
        %v1531 = vsel %vm1008, %v1523, -inf
        %1532 = vmax.xlane.f32.xlu0 %v1531
        %v1533 = vpop.xlane.xlu0 %1532
        %v1534 = vsel %vm1008, %v1524, -inf
        %1535 = vmax.xlane.f32.xlu0 %v1534
        %v1536 = vpop.xlane.xlu0 %1535
        %v1537 = vsub.f32 %v1521, %v1527
        %v1538 = vsub.f32 %v1522, %v1530
        %v1539 = vsub.f32 %v1523, %v1533
        %v1540 = vsub.f32 %v1524, %v1536
        %v1541 = vmul.f32 %v1537, 1.442695
        %v1542 = vpow.pop %v1541
        %v1543 = vmul.f32 %v1538, 1.442695
        %v1544 = vpow.pop %v1543
        %v1545 = vmul.f32 %v1539, 1.442695
        %v1546 = vpow.pop %v1545
        %v1547 = vmul.f32 %v1540, 1.442695
        %v1548 = vpow.pop %v1547
        %v1549 = vsel %vm1008, %v1542, 0.0
        %1550 = vadd.xlane.f32.xlu0 %v1549
        %v1551 = vpop.xlane.xlu0 %1550
        %v1552 = vsel %vm1008, %v1544, 0.0
        %1553 = vadd.xlane.f32.xlu0 %v1552
        %v1554 = vpop.xlane.xlu0 %1553
        %v1555 = vsel %vm1008, %v1546, 0.0
        %1556 = vadd.xlane.f32.xlu0 %v1555
        %v1557 = vpop.xlane.xlu0 %1556
        %v1558 = vsel %vm1008, %v1548, 0.0
        %1559 = vadd.xlane.f32.xlu0 %v1558
        %v1560 = vpop.xlane.xlu0 %1559
        %v1561 = vrcp.pop %v1551
        %v1562 = vrcp.pop %v1554
        %v1563 = vrcp.pop %v1557
        %v1564 = vrcp.pop %v1560
        %v1565 = vmul.f32 %v1551, %v1561
        %v1566 = vmul.f32 %v1554, %v1562
        %v1567 = vmul.f32 %v1557, %v1563
        %v1568 = vmul.f32 %v1560, %v1564
        %v1569 = vsub.f32 2.0, %v1565
        %v1570 = vsub.f32 2.0, %v1566
        %v1571 = vsub.f32 2.0, %v1567
        %v1572 = vsub.f32 2.0, %v1568
        %v1573 = vmul.f32 %v1561, %v1569
        %v1574 = vmul.f32 %v1562, %v1570
        %v1575 = vmul.f32 %v1563, %v1571
        %v1576 = vmul.f32 %v1564, %v1572
        %v1577 = vpack.c.bf16 %v1544, %v1542
        %v1578 = vpack.c.bf16 %v1548, %v1546
        %1579 = vrot.lane.b32.xlu0 %v903, 64
        %v1580 = vpop.permute.xlu0 %1579
        %v1583 = vsel %vm1008, %v1577, 0
        %1585 = vmatprep.subr.bf16.mxu0 0
        %1586 = vmatpush1.bf16.msra.mxu0 %v1580
        %1587 = vmatprep.subr.bf16.mxu0 0
        %1588 = vmatpush1.bf16.msra.mxu0 0
        %1589 = vmatprep.subr.bf16.mxu0 0
        %1590 = vmatpush1.bf16.msra.mxu0 0
        %1591 = vmatprep.subr.bf16.mxu0 0
        %1592 = vmatpush1.bf16.msra.mxu0 0
        %1593 = vmatprep.subr.bf16.mxu0 0
        %1594 = vmatpush1.bf16.msra.mxu0 0
        %1595 = vmatprep.subr.bf16.mxu0 0
        %1596 = vmatpush1.bf16.msra.mxu0 0
        %1597 = vmatprep.subr.bf16.mxu0 0
        %1598 = vmatpush1.bf16.msra.mxu0 0
        %1599 = vmatprep.subr.bf16.mxu0 0
        %1600 = vmatpush1.bf16.msra.mxu0 0
        %1601 = vmatprep.subr.bf16.mxu0 0
        %1602 = vmatpush1.bf16.msra.mxu0 0
        %1603 = vmatprep.subr.bf16.mxu0 0
        %1604 = vmatpush1.bf16.msra.mxu0 0
        %1605 = vmatprep.subr.bf16.mxu0 0
        %1606 = vmatpush1.bf16.msra.mxu0 0
        %1607 = vmatprep.subr.bf16.mxu0 0
        %1608 = vmatpush1.bf16.msra.mxu0 0
        %1609 = vmatprep.subr.bf16.mxu0 0
        %1610 = vmatpush1.bf16.msra.mxu0 0
        %1611 = vmatprep.subr.bf16.mxu0 0
        %1612 = vmatpush1.bf16.msra.mxu0 0
        %1613 = vmatprep.subr.bf16.mxu0 0
        %1614 = vmatpush1.bf16.msra.mxu0 0
        %1615 = vmatprep.subr.bf16.mxu0 0
        %1616 = vmatpush1.bf16.msra.mxu0 0
        %1617 = vmatprep.mubr.bf16.mxu0 0
        %1618 = vmatmul.mubr.bf16.gmra.mrb[0].mxu0 %v1583
        %v1619 = vpop.f32.mrb[0].mxu0
        %v1620 = vadd.f32 0.0, %v1619
        %v1621 = vpop.f32.mrb[0].mxu0
        %v1622 = vpop.f32.mrb[0].mxu0
        %v1623 = vadd.f32 0.0, %v1622
        %v1624 = vpop.f32.mrb[0].mxu0
        %1625 = vdwg.mxu0
        %1626 = vrot.lane.b32.xlu0 %v904, 64
        %v1627 = vpop.permute.xlu0 %1626
        %v1630 = vsel %vm1008, %v1578, 0
        %1632 = vmatprep.subr.bf16.mxu0 0
        %1633 = vmatpush1.bf16.msra.mxu0 %v1627
        %1634 = vmatprep.subr.bf16.mxu0 0
        %1635 = vmatpush1.bf16.msra.mxu0 0
        %1636 = vmatprep.subr.bf16.mxu0 0
        %1637 = vmatpush1.bf16.msra.mxu0 0
        %1638 = vmatprep.subr.bf16.mxu0 0
        %1639 = vmatpush1.bf16.msra.mxu0 0
        %1640 = vmatprep.subr.bf16.mxu0 0
        %1641 = vmatpush1.bf16.msra.mxu0 0
        %1642 = vmatprep.subr.bf16.mxu0 0
        %1643 = vmatpush1.bf16.msra.mxu0 0
        %1644 = vmatprep.subr.bf16.mxu0 0
        %1645 = vmatpush1.bf16.msra.mxu0 0
        %1646 = vmatprep.subr.bf16.mxu0 0
        %1647 = vmatpush1.bf16.msra.mxu0 0
        %1648 = vmatprep.subr.bf16.mxu0 0
        %1649 = vmatpush1.bf16.msra.mxu0 0
        %1650 = vmatprep.subr.bf16.mxu0 0
        %1651 = vmatpush1.bf16.msra.mxu0 0
        %1652 = vmatprep.subr.bf16.mxu0 0
        %1653 = vmatpush1.bf16.msra.mxu0 0
        %1654 = vmatprep.subr.bf16.mxu0 0
        %1655 = vmatpush1.bf16.msra.mxu0 0
        %1656 = vmatprep.subr.bf16.mxu0 0
        %1657 = vmatpush1.bf16.msra.mxu0 0
        %1658 = vmatprep.subr.bf16.mxu0 0
        %1659 = vmatpush1.bf16.msra.mxu0 0
        %1660 = vmatprep.subr.bf16.mxu0 0
        %1661 = vmatpush1.bf16.msra.mxu0 0
        %1662 = vmatprep.subr.bf16.mxu0 0
        %1663 = vmatpush1.bf16.msra.mxu0 0
        %1664 = vmatprep.mubr.bf16.mxu0 0
        %1665 = vmatmul.mubr.bf16.gmra.mrb[0].mxu0 %v1630
        %v1666 = vpop.f32.mrb[0].mxu0
        %v1667 = vadd.f32 0.0, %v1666
        %v1668 = vpop.f32.mrb[0].mxu0
        %v1669 = vpop.f32.mrb[0].mxu0
        %v1670 = vadd.f32 0.0, %v1669
        %v1671 = vpop.f32.mrb[0].mxu0
        %1672 = vdwg.mxu0
        %v1673 = vmul.f32 %v1620, %v1573
        %v1674 = vmul.f32 %v1623, %v1574
        %v1675 = vmul.f32 %v1667, %v1575
        %v1676 = vmul.f32 %v1670, %v1576
        %1677 = vrot.lane.b32.xlu0 %v899, 32
        %v1678 = vpop.permute.xlu0 %1677
        %1679 = vrot.lane.b32.xlu0 %v901, 32
        %v1680 = vpop.permute.xlu0 %1679
        %v1682 = vsel %vm905, %v1678, 0
        %v1685 = vsel %vm905, %v1680, 0
        %1687 = vmatprep.subr.bf16.mxu0 0
        %1688 = vmatpush1.bf16.xpose.msra.mxu0 %v1685
        %1689 = vmatprep.subr.bf16.mxu0 0
        %1690 = vmatpush1.bf16.xpose.msra.mxu0 0
        %1691 = vmatprep.subr.bf16.mxu0 0
        %1692 = vmatpush1.bf16.xpose.msra.mxu0 0
        %1693 = vmatprep.subr.bf16.mxu0 0
        %1694 = vmatpush1.bf16.xpose.msra.mxu0 0
        %1695 = vmatprep.subr.bf16.mxu0 0
        %1696 = vmatpush1.bf16.xpose.msra.mxu0 0
        %1697 = vmatprep.subr.bf16.mxu0 0
        %1698 = vmatpush1.bf16.xpose.msra.mxu0 0
        %1699 = vmatprep.subr.bf16.mxu0 0
        %1700 = vmatpush1.bf16.xpose.msra.mxu0 0
        %1701 = vmatprep.subr.bf16.mxu0 0
        %1702 = vmatpush1.bf16.xpose.msra.mxu0 0
        %1703 = vmatprep.subr.bf16.mxu0 0
        %1704 = vmatpush1.bf16.xpose.msra.mxu0 0
        %1705 = vmatprep.subr.bf16.mxu0 0
        %1706 = vmatpush1.bf16.xpose.msra.mxu0 0
        %1707 = vmatprep.subr.bf16.mxu0 0
        %1708 = vmatpush1.bf16.xpose.msra.mxu0 0
        %1709 = vmatprep.subr.bf16.mxu0 0
        %1710 = vmatpush1.bf16.xpose.msra.mxu0 0
        %1711 = vmatprep.subr.bf16.mxu0 0
        %1712 = vmatpush1.bf16.xpose.msra.mxu0 0
        %1713 = vmatprep.subr.bf16.mxu0 0
        %1714 = vmatpush1.bf16.xpose.msra.mxu0 0
        %1715 = vmatprep.subr.bf16.mxu0 0
        %1716 = vmatpush1.bf16.xpose.msra.mxu0 0
        %1717 = vmatprep.subr.bf16.mxu0 0
        %1718 = vmatpush1.bf16.xpose.msra.mxu0 0
        %1719 = vmatprep.mubr.bf16.mxu0 0
        %1720 = vmatmul.mubr.bf16.gmra.mrb[0].mxu0 %v1682
        %v1721 = vpop.f32.mrb[0].mxu0
        %v1722 = vadd.f32 0.0, %v1721
        %v1723 = vpop.f32.mrb[0].mxu0
        %v1724 = vpop.f32.mrb[0].mxu0
        %v1725 = vadd.f32 0.0, %v1724
        %v1726 = vpop.f32.mrb[0].mxu0
        %1727 = vdwg.mxu0
        %1728 = vrot.lane.b32.xlu0 %v900, 32
        %v1729 = vpop.permute.xlu0 %1728
        %1730 = vrot.lane.b32.xlu0 %v902, 32
        %v1731 = vpop.permute.xlu0 %1730
        %v1733 = vsel %vm905, %v1729, 0
        %v1736 = vsel %vm905, %v1731, 0
        %1738 = vmatprep.subr.bf16.mxu0 0
        %1739 = vmatpush1.bf16.xpose.msra.mxu0 %v1736
        %1740 = vmatprep.subr.bf16.mxu0 0
        %1741 = vmatpush1.bf16.xpose.msra.mxu0 0
        %1742 = vmatprep.subr.bf16.mxu0 0
        %1743 = vmatpush1.bf16.xpose.msra.mxu0 0
        %1744 = vmatprep.subr.bf16.mxu0 0
        %1745 = vmatpush1.bf16.xpose.msra.mxu0 0
        %1746 = vmatprep.subr.bf16.mxu0 0
        %1747 = vmatpush1.bf16.xpose.msra.mxu0 0
        %1748 = vmatprep.subr.bf16.mxu0 0
        %1749 = vmatpush1.bf16.xpose.msra.mxu0 0
        %1750 = vmatprep.subr.bf16.mxu0 0
        %1751 = vmatpush1.bf16.xpose.msra.mxu0 0
        %1752 = vmatprep.subr.bf16.mxu0 0
        %1753 = vmatpush1.bf16.xpose.msra.mxu0 0
        %1754 = vmatprep.subr.bf16.mxu0 0
        %1755 = vmatpush1.bf16.xpose.msra.mxu0 0
        %1756 = vmatprep.subr.bf16.mxu0 0
        %1757 = vmatpush1.bf16.xpose.msra.mxu0 0
        %1758 = vmatprep.subr.bf16.mxu0 0
        %1759 = vmatpush1.bf16.xpose.msra.mxu0 0
        %1760 = vmatprep.subr.bf16.mxu0 0
        %1761 = vmatpush1.bf16.xpose.msra.mxu0 0
        %1762 = vmatprep.subr.bf16.mxu0 0
        %1763 = vmatpush1.bf16.xpose.msra.mxu0 0
        %1764 = vmatprep.subr.bf16.mxu0 0
        %1765 = vmatpush1.bf16.xpose.msra.mxu0 0
        %1766 = vmatprep.subr.bf16.mxu0 0
        %1767 = vmatpush1.bf16.xpose.msra.mxu0 0
        %1768 = vmatprep.subr.bf16.mxu0 0
        %1769 = vmatpush1.bf16.xpose.msra.mxu0 0
        %1770 = vmatprep.mubr.bf16.mxu0 0
        %1771 = vmatmul.mubr.bf16.gmra.mrb[0].mxu0 %v1733
        %v1772 = vpop.f32.mrb[0].mxu0
        %v1773 = vadd.f32 0.0, %v1772
        %v1774 = vpop.f32.mrb[0].mxu0
        %v1775 = vpop.f32.mrb[0].mxu0
        %v1776 = vadd.f32 0.0, %v1775
        %v1777 = vpop.f32.mrb[0].mxu0
        %1778 = vdwg.mxu0
        %v1779 = vsel %vm1002, -1e+09, %v1722
        %v1780 = vsel %vm1003, -1e+09, %v1725
        %v1781 = vsel %vm1002, -1e+09, %v1773
        %v1782 = vsel %vm1003, -1e+09, %v1776
        %v1783 = vsel %vm1008, %v1779, -inf
        %1784 = vmax.xlane.f32.xlu0 %v1783
        %v1785 = vpop.xlane.xlu0 %1784
        %v1786 = vsel %vm1008, %v1780, -inf
        %1787 = vmax.xlane.f32.xlu0 %v1786
        %v1788 = vpop.xlane.xlu0 %1787
        %v1789 = vsel %vm1008, %v1781, -inf
        %1790 = vmax.xlane.f32.xlu0 %v1789
        %v1791 = vpop.xlane.xlu0 %1790
        %v1792 = vsel %vm1008, %v1782, -inf
        %1793 = vmax.xlane.f32.xlu0 %v1792
        %v1794 = vpop.xlane.xlu0 %1793
        %v1795 = vsub.f32 %v1779, %v1785
        %v1796 = vsub.f32 %v1780, %v1788
        %v1797 = vsub.f32 %v1781, %v1791
        %v1798 = vsub.f32 %v1782, %v1794
        %v1799 = vmul.f32 %v1795, 1.442695
        %v1800 = vpow.pop %v1799
        %v1801 = vmul.f32 %v1796, 1.442695
        %v1802 = vpow.pop %v1801
        %v1803 = vmul.f32 %v1797, 1.442695
        %v1804 = vpow.pop %v1803
        %v1805 = vmul.f32 %v1798, 1.442695
        %v1806 = vpow.pop %v1805
        %v1807 = vsel %vm1008, %v1800, 0.0
        %1808 = vadd.xlane.f32.xlu0 %v1807
        %v1809 = vpop.xlane.xlu0 %1808
        %v1810 = vsel %vm1008, %v1802, 0.0
        %1811 = vadd.xlane.f32.xlu0 %v1810
        %v1812 = vpop.xlane.xlu0 %1811
        %v1813 = vsel %vm1008, %v1804, 0.0
        %1814 = vadd.xlane.f32.xlu0 %v1813
        %v1815 = vpop.xlane.xlu0 %1814
        %v1816 = vsel %vm1008, %v1806, 0.0
        %1817 = vadd.xlane.f32.xlu0 %v1816
        %v1818 = vpop.xlane.xlu0 %1817
        %v1819 = vrcp.pop %v1809
        %v1820 = vrcp.pop %v1812
        %v1821 = vrcp.pop %v1815
        %v1822 = vrcp.pop %v1818
        %v1823 = vmul.f32 %v1809, %v1819
        %v1824 = vmul.f32 %v1812, %v1820
        %v1825 = vmul.f32 %v1815, %v1821
        %v1826 = vmul.f32 %v1818, %v1822
        %v1827 = vsub.f32 2.0, %v1823
        %v1828 = vsub.f32 2.0, %v1824
        %v1829 = vsub.f32 2.0, %v1825
        %v1830 = vsub.f32 2.0, %v1826
        %v1831 = vmul.f32 %v1819, %v1827
        %v1832 = vmul.f32 %v1820, %v1828
        %v1833 = vmul.f32 %v1821, %v1829
        %v1834 = vmul.f32 %v1822, %v1830
        %v1835 = vpack.c.bf16 %v1802, %v1800
        %v1836 = vpack.c.bf16 %v1806, %v1804
        %1837 = vrot.lane.b32.xlu0 %v903, 32
        %v1838 = vpop.permute.xlu0 %1837
        %v1841 = vsel %vm1008, %v1835, 0
        %1843 = vmatprep.subr.bf16.mxu0 0
        %1844 = vmatpush1.bf16.msra.mxu0 %v1838
        %1845 = vmatprep.subr.bf16.mxu0 0
        %1846 = vmatpush1.bf16.msra.mxu0 0
        %1847 = vmatprep.subr.bf16.mxu0 0
        %1848 = vmatpush1.bf16.msra.mxu0 0
        %1849 = vmatprep.subr.bf16.mxu0 0
        %1850 = vmatpush1.bf16.msra.mxu0 0
        %1851 = vmatprep.subr.bf16.mxu0 0
        %1852 = vmatpush1.bf16.msra.mxu0 0
        %1853 = vmatprep.subr.bf16.mxu0 0
        %1854 = vmatpush1.bf16.msra.mxu0 0
        %1855 = vmatprep.subr.bf16.mxu0 0
        %1856 = vmatpush1.bf16.msra.mxu0 0
        %1857 = vmatprep.subr.bf16.mxu0 0
        %1858 = vmatpush1.bf16.msra.mxu0 0
        %1859 = vmatprep.subr.bf16.mxu0 0
        %1860 = vmatpush1.bf16.msra.mxu0 0
        %1861 = vmatprep.subr.bf16.mxu0 0
        %1862 = vmatpush1.bf16.msra.mxu0 0
        %1863 = vmatprep.subr.bf16.mxu0 0
        %1864 = vmatpush1.bf16.msra.mxu0 0
        %1865 = vmatprep.subr.bf16.mxu0 0
        %1866 = vmatpush1.bf16.msra.mxu0 0
        %1867 = vmatprep.subr.bf16.mxu0 0
        %1868 = vmatpush1.bf16.msra.mxu0 0
        %1869 = vmatprep.subr.bf16.mxu0 0
        %1870 = vmatpush1.bf16.msra.mxu0 0
        %1871 = vmatprep.subr.bf16.mxu0 0
        %1872 = vmatpush1.bf16.msra.mxu0 0
        %1873 = vmatprep.subr.bf16.mxu0 0
        %1874 = vmatpush1.bf16.msra.mxu0 0
        %1875 = vmatprep.mubr.bf16.mxu0 0
        %1876 = vmatmul.mubr.bf16.gmra.mrb[0].mxu0 %v1841
        %v1877 = vpop.f32.mrb[0].mxu0
        %v1878 = vadd.f32 0.0, %v1877
        %v1879 = vpop.f32.mrb[0].mxu0
        %v1880 = vpop.f32.mrb[0].mxu0
        %v1881 = vadd.f32 0.0, %v1880
        %v1882 = vpop.f32.mrb[0].mxu0
        %1883 = vdwg.mxu0
        %1884 = vrot.lane.b32.xlu0 %v904, 32
        %v1885 = vpop.permute.xlu0 %1884
        %v1888 = vsel %vm1008, %v1836, 0
        %1890 = vmatprep.subr.bf16.mxu0 0
        %1891 = vmatpush1.bf16.msra.mxu0 %v1885
        %1892 = vmatprep.subr.bf16.mxu0 0
        %1893 = vmatpush1.bf16.msra.mxu0 0
        %1894 = vmatprep.subr.bf16.mxu0 0
        %1895 = vmatpush1.bf16.msra.mxu0 0
        %1896 = vmatprep.subr.bf16.mxu0 0
        %1897 = vmatpush1.bf16.msra.mxu0 0
        %1898 = vmatprep.subr.bf16.mxu0 0
        %1899 = vmatpush1.bf16.msra.mxu0 0
        %1900 = vmatprep.subr.bf16.mxu0 0
        %1901 = vmatpush1.bf16.msra.mxu0 0
        %1902 = vmatprep.subr.bf16.mxu0 0
        %1903 = vmatpush1.bf16.msra.mxu0 0
        %1904 = vmatprep.subr.bf16.mxu0 0
        %1905 = vmatpush1.bf16.msra.mxu0 0
        %1906 = vmatprep.subr.bf16.mxu0 0
        %1907 = vmatpush1.bf16.msra.mxu0 0
        %1908 = vmatprep.subr.bf16.mxu0 0
        %1909 = vmatpush1.bf16.msra.mxu0 0
        %1910 = vmatprep.subr.bf16.mxu0 0
        %1911 = vmatpush1.bf16.msra.mxu0 0
        %1912 = vmatprep.subr.bf16.mxu0 0
        %1913 = vmatpush1.bf16.msra.mxu0 0
        %1914 = vmatprep.subr.bf16.mxu0 0
        %1915 = vmatpush1.bf16.msra.mxu0 0
        %1916 = vmatprep.subr.bf16.mxu0 0
        %1917 = vmatpush1.bf16.msra.mxu0 0
        %1918 = vmatprep.subr.bf16.mxu0 0
        %1919 = vmatpush1.bf16.msra.mxu0 0
        %1920 = vmatprep.subr.bf16.mxu0 0
        %1921 = vmatpush1.bf16.msra.mxu0 0
        %1922 = vmatprep.mubr.bf16.mxu0 0
        %1923 = vmatmul.mubr.bf16.gmra.mrb[0].mxu0 %v1888
        %v1924 = vpop.f32.mrb[0].mxu0
        %v1925 = vadd.f32 0.0, %v1924
        %v1926 = vpop.f32.mrb[0].mxu0
        %v1927 = vpop.f32.mrb[0].mxu0
        %v1928 = vadd.f32 0.0, %v1927
        %v1929 = vpop.f32.mrb[0].mxu0
        %1930 = vdwg.mxu0
        %v1931 = vmul.f32 %v1878, %v1831
        %v1932 = vmul.f32 %v1881, %v1832
        %v1933 = vmul.f32 %v1925, %v1833
        %v1934 = vmul.f32 %v1928, %v1834
        %1939 = vrot.lane.b32.xlu0 %v1415, 32
        %v1940 = vpop.permute.xlu0 %1939
        %1941 = vrot.lane.b32.xlu0 %v1416, 32
        %v1942 = vpop.permute.xlu0 %1941
        %1943 = vrot.lane.b32.xlu0 %v1417, 32
        %v1944 = vpop.permute.xlu0 %1943
        %1945 = vrot.lane.b32.xlu0 %v1418, 32
        %v1946 = vpop.permute.xlu0 %1945
        %1955 = vrot.lane.b32.xlu0 %v1673, 64
        %v1956 = vpop.permute.xlu0 %1955
        %1957 = vrot.lane.b32.xlu0 %v1674, 64
        %v1958 = vpop.permute.xlu0 %1957
        %1959 = vrot.lane.b32.xlu0 %v1675, 64
        %v1960 = vpop.permute.xlu0 %1959
        %1961 = vrot.lane.b32.xlu0 %v1676, 64
        %v1962 = vpop.permute.xlu0 %1961
        %1971 = vrot.lane.b32.xlu0 %v1931, 96
        %v1972 = vpop.permute.xlu0 %1971
        %1973 = vrot.lane.b32.xlu0 %v1932, 96
        %v1974 = vpop.permute.xlu0 %1973
        %1975 = vrot.lane.b32.xlu0 %v1933, 96
        %v1976 = vpop.permute.xlu0 %1975
        %1977 = vrot.lane.b32.xlu0 %v1934, 96
        %v1978 = vpop.permute.xlu0 %1977
        %v1983 = vsel %vm905, %v1151, %v1940
        %v1984 = vsel %vm905, %v1152, %v1942
        %v1985 = vsel %vm905, %v1153, %v1944
        %v1986 = vsel %vm905, %v1154, %v1946
        %vm1987 = vcmask 523264
        %v1988 = vsel %vm1987, %v1983, %v1956
        %v1989 = vsel %vm1987, %v1984, %v1958
        %v1990 = vsel %vm1987, %v1985, %v1960
        %v1991 = vsel %vm1987, %v1986, %v1962
        %vm1992 = vcmask 785408
        %v1993 = vsel %vm1992, %v1988, %v1972
        %v1994 = vsel %vm1992, %v1989, %v1974
        %v1995 = vsel %vm1992, %v1990, %v1976
        %v1996 = vsel %vm1992, %v1991, %v1978
        %v1997 = vpack.c.bf16 %v1994, %v1993
        %v1998 = vpack.c.bf16 %v1996, %v1995
        %v1999 = vld [vmem:[#allocation13] sm:$0xf]
        %v2000 = vld [vmem:[#allocation13 + $0x4] sm:$0xf]
        %v2001 = vld [vmem:[#allocation13 + $0x8] sm:$0xf]
        %v2002 = vld [vmem:[#allocation13 + $0xc] sm:$0xf]
        %v2003 = vld [vmem:[#allocation13 + $0x10] sm:$0xf]
        %v2004 = vld [vmem:[#allocation13 + $0x14] sm:$0xf]
        %v2005 = vld [vmem:[#allocation13 + $0x18] sm:$0xf]
        %v2006 = vld [vmem:[#allocation13 + $0x1c] sm:$0xf]
        %v2007 = vld [vmem:[#allocation13 + $0x20] sm:$0xf]
        %v2008 = vld [vmem:[#allocation13 + $0x24] sm:$0xf]
        %v2009 = vld [vmem:[#allocation13 + $0x28] sm:$0xf]
        %v2010 = vld [vmem:[#allocation13 + $0x2c] sm:$0xf]
        %v2011 = vld [vmem:[#allocation13 + $0x30] sm:$0xf]
        %v2012 = vld [vmem:[#allocation13 + $0x34] sm:$0xf]
        %v2013 = vld [vmem:[#allocation13 + $0x38] sm:$0xf]
        %v2014 = vld [vmem:[#allocation13 + $0x3c] sm:$0xf]
        %v2015 = vld [vmem:[%s9] sm:$0x1]
        %v2017 = vlaneseq
        %v2018 = vshrl.u32 %v2017, 7
        %v2019 = vsub.s32 0, %v2018
        %v2020 = vrot.slane %v2015, %v2019
        %v2038 = vunpack.c.l.b16 %v1999
        %v2039 = vunpack.c.l.b16 %v2000
        %v2040 = vunpack.c.l.b16 %v2001
        %v2041 = vunpack.c.l.b16 %v2002
        %v2042 = vunpack.c.l.b16 %v2003
        %v2043 = vunpack.c.l.b16 %v2004
        %v2044 = vunpack.c.l.b16 %v2005
        %v2045 = vunpack.c.l.b16 %v2006
        %v2046 = vunpack.c.l.b16 %v2007
        %v2047 = vunpack.c.l.b16 %v2008
        %v2048 = vunpack.c.l.b16 %v2009
        %v2049 = vunpack.c.l.b16 %v2010
        %v2050 = vunpack.c.l.b16 %v2011
        %v2051 = vunpack.c.l.b16 %v2012
        %v2052 = vunpack.c.l.b16 %v2013
        %v2053 = vunpack.c.l.b16 %v2014
        %v2054 = vpack.c.b16 %v2039, %v2038
        %v2055 = vpack.c.b16 %v2041, %v2040
        %v2056 = vpack.c.b16 %v2043, %v2042
        %v2057 = vpack.c.b16 %v2045, %v2044
        %v2058 = vpack.c.b16 %v2047, %v2046
        %v2059 = vpack.c.b16 %v2049, %v2048
        %v2060 = vpack.c.b16 %v2051, %v2050
        %v2061 = vpack.c.b16 %v2053, %v2052
        %2070 = vmatprep.subr.bf16.mxu0 0
        %2071 = vmatpush1.bf16.msra.mxu0 %v2054
        %2072 = vmatprep.subr.bf16.mxu0 0
        %2073 = vmatpush1.bf16.msra.mxu0 %v2055
        %2074 = vmatprep.subr.bf16.mxu0 0
        %2075 = vmatpush1.bf16.msra.mxu0 %v2056
        %2076 = vmatprep.subr.bf16.mxu0 0
        %2077 = vmatpush1.bf16.msra.mxu0 %v2057
        %2078 = vmatprep.subr.bf16.mxu0 0
        %2079 = vmatpush1.bf16.msra.mxu0 %v2058
        %2080 = vmatprep.subr.bf16.mxu0 0
        %2081 = vmatpush1.bf16.msra.mxu0 %v2059
        %2082 = vmatprep.subr.bf16.mxu0 0
        %2083 = vmatpush1.bf16.msra.mxu0 %v2060
        %2084 = vmatprep.subr.bf16.mxu0 0
        %2085 = vmatpush1.bf16.msra.mxu0 %v2061
        %2086 = vmatprep.subr.bf16.mxu0 0
        %2087 = vmatpush1.bf16.msra.mxu0 0
        %2088 = vmatprep.subr.bf16.mxu0 0
        %2089 = vmatpush1.bf16.msra.mxu0 0
        %2090 = vmatprep.subr.bf16.mxu0 0
        %2091 = vmatpush1.bf16.msra.mxu0 0
        %2092 = vmatprep.subr.bf16.mxu0 0
        %2093 = vmatpush1.bf16.msra.mxu0 0
        %2094 = vmatprep.subr.bf16.mxu0 0
        %2095 = vmatpush1.bf16.msra.mxu0 0
        %2096 = vmatprep.subr.bf16.mxu0 0
        %2097 = vmatpush1.bf16.msra.mxu0 0
        %2098 = vmatprep.subr.bf16.mxu0 0
        %2099 = vmatpush1.bf16.msra.mxu0 0
        %2100 = vmatprep.subr.bf16.mxu0 0
        %2101 = vmatpush1.bf16.msra.mxu0 0
        %2102 = vmatprep.mubr.bf16.mxu0 0
        %2103 = vmatmul.mubr.bf16.gmra.mrb[0].mxu0 %v1997
        %v2104 = vpop.f32.mrb[0].mxu0
        %v2105 = vadd.f32 %v2020, %v2104
        %v2106 = vpop.f32.mrb[0].mxu0
        %v2107 = vpop.f32.mrb[0].mxu0
        %v2108 = vadd.f32 %v2020, %v2107
        %v2109 = vpop.f32.mrb[0].mxu0
        %2110 = vmatprep.mubr.bf16.mxu0 0
        %2111 = vmatmul.mubr.bf16.gmra.mrb[0].mxu0 %v1998
        %v2112 = vpop.f32.mrb[0].mxu0
        %v2113 = vadd.f32 %v2020, %v2112
        %v2114 = vpop.f32.mrb[0].mxu0
        %v2115 = vpop.f32.mrb[0].mxu0
        %v2116 = vadd.f32 %v2020, %v2115
        %v2117 = vpop.f32.mrb[0].mxu0
        %2118 = vdwg.mxu0
        %2119 = vst [vmem:[%s515] sm:$0xff] %v2105
        %2120 = vst [vmem:[%s515 + $0x8] sm:$0xff] %v2108
        %2121 = vst [vmem:[%s515 + $0x10] sm:$0xff] %v2113
        %2122 = vst [vmem:[%s515 + $0x18] sm:$0xff] %v2116
        %s2123 = sand.u32 %s265, 1
        %s2124 = scalar_lea.sflag [#allocation4], %s2123
        %s2125 = sand.u32 %s265, 1
        %s2126 = smul.addr %s2125, 32
        %s2127 = scalar_lea.vmem [#allocation14], %s2126
        // Predicated region
        $region89: #{tpu_custom_call.1} parent=59 // pred_check
          %p2128 = pneg %p275
        $region90: #{tpu_custom_call.1} parent=59 // pred_check_branch
          %2130 = sbr.rel (%p2128) target = $region92
        $region91: #{tpu_custom_call.1} parent=59 // pred_region
          %s2131 = smul.u32 2, %s32
          %s2133 = ssub.s32 512, 512
          %2134 = vsyncadd %s2124, %s2133
          %s2135 = smul.addr %s2131, 2
          %s2136 = smul.addr %s2135, 128
          %s2137 = scalar_lea.hbm %s10, %s2136
          %s2138 = sshll.u32 %s2127, 4
          %s2139 = int_to_ptr.vmem [resolvable:$true] %s2138
          %2144 = dma.vmem_to_hbm [thread:$0]  %s2139, 512, %s2137, %s2124, 128, 128, 8
        $region92: #{tpu_custom_call.1} parent=59 // pred_fallthru
          _
      $region60: #{tpu_custom_call.1} parent=5 // pred_fallthru
        _
      %p2145 = scmp.le.s32.totalorder 2, %s27
      // Predicated region
      $region93: #{tpu_custom_call.1} parent=5 // pred_check
        %p2146 = pneg %p2145
      $region94: #{tpu_custom_call.1} parent=5 // pred_check_branch
        %2148 = sbr.rel (%p2146) target = $region96
      $region95: #{tpu_custom_call.1} parent=5 // pred_region
        %s2149 = ssub.s32 %s27, 2
        // Predicated region
        $region97: #{tpu_custom_call.1} parent=95 // pred_check
          %p2150 = pneg %p281
        $region98: #{tpu_custom_call.1} parent=95 // pred_check_branch
          %2152 = sbr.rel (%p2150) target = $region100
        $region99: #{tpu_custom_call.1} parent=95 // pred_region
          %s2153 = sand.u32 %s266, 1
          %s2154 = scalar_lea.sflag [#allocation4], %s2153
          %s2155 = sand.u32 %s266, 1
          %s2156 = smul.addr %s2155, 32
          %s2157 = scalar_lea.vmem [#allocation14], %s2156
          %2158 = dma.done %s2154, 512
        $region100: #{tpu_custom_call.1} parent=95 // pred_fallthru
          _
      $region96: #{tpu_custom_call.1} parent=5 // pred_fallthru
        _
    $region6: #{tpu_custom_call.1} parent=1 // loop_footer
      %s31 = sadd.s32 1, %s27
    $region7: #{tpu_custom_call.1} parent=1 // loop_footer_branch
      %26 = sbr.rel target = $region3
    $region8: #{tpu_custom_call.1} parent=1 // loop_exit
      _
    %2159 = vsyncpa [#allocation3], 1
    %s2160 = scalar_lea.sflag [#allocation3], 1
    %2161 = vsyncpa %s2160, 1
    %2162 = vsyncpa [#allocation6], 1
    %s2163 = scalar_lea.sflag [#allocation6], 1
    %2164 = vsyncpa %s2163, 1
    %2165 = vsyncpa [#allocation9], 1
    %2166 = vsyncpa [#allocation12], 1
    %2167 = vsyncpa [#allocation4], 1
    %s2168 = scalar_lea.sflag [#allocation4], 1
    %2169 = vsyncpa %s2168, 1

</llo_original>
